<compile_context>
chip_gen: v6e
topology: v6e:2x2x1
jax: 0.10.0
libtpu: 0.0.40
codegen_flags: <defaults>
</compile_context>

<pallas_src>
import functools

import jax
import jax.numpy as jnp
import numpy as np
from jax import lax
from jax.experimental import pallas as pl
from jax.experimental.pallas import tpu as pltpu


def _round_up(x, m):
    return ((x + m - 1) // m) * m


# ----------------------------------------------------------------------------
# Pallas kernel: one LSTM layer, one time chunk per grid step.
# Refs:
#   x_ref     : (Tc, Bp, Ein)   input chunk, time-major (padded batch/features)
#   w_ih_ref  : (Ein, 4*Hp)     input->gates weight (gate-padded, transposed)
#   w_hh_ref  : (Hp, 4*Hp)      hidden->gates weight
#   b_ref     : (1, 4*Hp)       b_ih + b_hh (gate-padded)
#   out_ref   : (Tc, Bp, Hp)    per-step hidden states for this chunk
#   h_out_ref : (Bp, Hp)        final hidden state
#   c_out_ref : (Bp, Hp)        final cell state
# Scratch:
#   h_scr, c_scr : (Bp, Hp)     recurrent state carried across time chunks
#   xg_scr       : (Tc*Bp, 4Hp) hoisted input projection for this chunk
# ----------------------------------------------------------------------------
def lstm_layer_kernel(x_ref, w_ih_ref, w_hh_ref, b_ref,
                      out_ref, h_out_ref, c_out_ref,
                      h_scr, c_scr, xg_scr,
                      *, seq_len, time_chunk, needs_mask, unroll):
    chunk = pl.program_id(0)
    Tc, Bp, E_in = x_ref.shape
    Hp = h_scr.shape[1]

    @pl.when(chunk == 0)
    def _init():
        # h0 = c0 = 0 (PyTorch default when no initial state is passed).
        h_scr[...] = jnp.zeros_like(h_scr)
        c_scr[...] = jnp.zeros_like(c_scr)

    # Hoisted input projection for the whole chunk: one large MXU matmul
    # (Tc*Bp, Ein) x (Ein, 4Hp), bias folded in once.
    x2d = x_ref[...].reshape(Tc * Bp, E_in)
    xg_scr[...] = (
        jnp.dot(x2d, w_ih_ref[...], preferred_element_type=jnp.float32)
        + b_ref[...]
    )

    w_hh = w_hh_ref[...]

    def step(t, carry):
        h_prev, c_prev = carry
        row = pl.multiple_of(t * Bp, Bp)
        # Only the recurrent matmul remains on the serial path.
        gates = xg_scr[pl.ds(row, Bp), :] + jnp.dot(
            h_prev, w_hh, preferred_element_type=jnp.float32)

        # Hp is a multiple of 128 -> all gate slices are full lane groups.
        i_g = jax.nn.sigmoid(gates[:, 0 * Hp:1 * Hp])
        f_g = jax.nn.sigmoid(gates[:, 1 * Hp:2 * Hp])
        g_g = jnp.tanh(gates[:, 2 * Hp:3 * Hp])
        o_g = jax.nn.sigmoid(gates[:, 3 * Hp:4 * Hp])

        c_new = f_g * c_prev + i_g * g_g
        h_new = o_g * jnp.tanh(c_new)

        if needs_mask:
            # Only taken when the time axis was padded (T % time_chunk != 0):
            # padded steps must not advance the recurrent state.
            valid = (chunk * time_chunk + t) < seq_len
            h_new = jnp.where(valid, h_new, h_prev)
            c_new = jnp.where(valid, c_new, c_prev)

        out_ref[t] = h_new
        return h_new, c_new

    h_last, c_last = lax.fori_loop(
        0, Tc, step, (h_scr[...], c_scr[...]), unroll=unroll)

    # Persist the recurrent state across chunks; expose the running final
    # state through the (VMEM-resident) output blocks.
    h_scr[...] = h_last
    c_scr[...] = c_last
    h_out_ref[...] = h_last
    c_out_ref[...] = c_last


def lstm_layer(x_tbe, w_ih_t, w_hh_t, bias, *, seq_len, time_chunk):
    """x_tbe: (Tp, Bp, Ein) f32 -> (out (Tp,Bp,Hp), h_last (Bp,Hp), c_last (Bp,Hp))."""
    Tp, Bp, E_in = x_tbe.shape
    Hp = w_hh_t.shape[0]
    G = w_ih_t.shape[1]                      # 4 * Hp
    num_chunks = Tp // time_chunk
    needs_mask = (Tp != seq_len)
    unroll = True if time_chunk <= 32 else 8

    kernel = functools.partial(
        lstm_layer_kernel,
        seq_len=seq_len,
        time_chunk=time_chunk,
        needs_mask=needs_mask,
        unroll=unroll,
    )

    out, h_last, c_last = pl.pallas_call(
        kernel,
        out_shape=(
            jax.ShapeDtypeStruct((Tp, Bp, Hp), jnp.float32),
            jax.ShapeDtypeStruct((Bp, Hp), jnp.float32),
            jax.ShapeDtypeStruct((Bp, Hp), jnp.float32),
        ),
        grid_spec=pltpu.PrefetchScalarGridSpec(
            num_scalar_prefetch=0,
            grid=(num_chunks,),
            in_specs=[
                pl.BlockSpec((time_chunk, Bp, E_in), lambda t: (t, 0, 0)),
                pl.BlockSpec((E_in, G), lambda t: (0, 0)),
                pl.BlockSpec((Hp, G), lambda t: (0, 0)),
                pl.BlockSpec((1, G), lambda t: (0, 0)),
            ],
            out_specs=(
                pl.BlockSpec((time_chunk, Bp, Hp), lambda t: (t, 0, 0)),
                pl.BlockSpec((Bp, Hp), lambda t: (0, 0)),
                pl.BlockSpec((Bp, Hp), lambda t: (0, 0)),
            ),
            scratch_shapes=[
                pltpu.VMEM((Bp, Hp), jnp.float32),
                pltpu.VMEM((Bp, Hp), jnp.float32),
                pltpu.VMEM((time_chunk * Bp, G), jnp.float32),
            ],
        ),
        compiler_params=pltpu.CompilerParams(
            dimension_semantics=("arbitrary",),
        ),
    )(x_tbe, w_ih_t, w_hh_t, bias)
    return out, h_last, c_last


# ----------------------------------------------------------------------------
# Weight packing: PyTorch (4H, in) layout -> gate-padded, transposed layout.
# Each gate block is padded H -> Hp and the input dim in -> in_p, so gate
# slices / MXU K dims are 128-lane aligned.  Padded rows/cols are zero, so
# padded hidden units stay exactly zero.
# ----------------------------------------------------------------------------
def _pack_layer(w_ih, w_hh, b_ih, b_hh, hp, in_p):
    four_h, in_sz = w_ih.shape
    H = four_h // 4

    def pad_w(w, cols, cols_p):
        w = w.reshape(4, H, cols)
        w = jnp.pad(w, ((0, 0), (0, hp - H), (0, cols_p - cols)))
        return w.reshape(4 * hp, cols_p)

    w_ih_p = pad_w(w_ih, in_sz, in_p)                 # (4Hp, in_p)
    w_hh_p = pad_w(w_hh, w_hh.shape[1], hp)           # (4Hp, Hp)
    b = (b_ih + b_hh).reshape(4, H)
    b = jnp.pad(b, ((0, 0), (0, hp - H))).reshape(1, 4 * hp)
    return jnp.transpose(w_ih_p), jnp.transpose(w_hh_p), b


# ----------------------------------------------------------------------------
# Parameter construction (deterministic, PyTorch-style uniform init).
# Raw PyTorch-layout weights are stored; packing happens in the forward.
# ----------------------------------------------------------------------------
def init_encoder_params(key, input_dim, embedding_dim, hidden_dim, n_layers):
    keys = jax.random.split(key, 1 + 4 * n_layers)
    params = {
        "embedding": jax.random.normal(
            keys[0], (input_dim, embedding_dim), jnp.float32
        )
    }
    bound = 1.0 / np.sqrt(hidden_dim)
    layers = []
    for l in range(n_layers):
        in_sz = embedding_dim if l == 0 else hidden_dim
        k0, k1, k2, k3 = keys[1 + 4 * l: 5 + 4 * l]
        layers.append({
            "w_ih": jax.random.uniform(k0, (4 * hidden_dim, in_sz), jnp.float32, -bound, bound),
            "w_hh": jax.random.uniform(k1, (4 * hidden_dim, hidden_dim), jnp.float32, -bound, bound),
            "b_ih": jax.random.uniform(k2, (4 * hidden_dim,), jnp.float32, -bound, bound),
            "b_hh": jax.random.uniform(k3, (4 * hidden_dim,), jnp.float32, -bound, bound),
        })
    params["layers"] = layers
    return params


# ----------------------------------------------------------------------------
# Encoder forward (matches PyTorch Encoder.forward, eval-mode dropout).
# ----------------------------------------------------------------------------
def encoder_forward(params, tokens, *, time_chunk=128):
    emb_table = params["embedding"].astype(jnp.float32)      # (V, E)
    V, E = emb_table.shape
    Ep = _round_up(E, 128)                                    # lane-dense layer-0 input
    emb_table = jnp.pad(emb_table, ((0, 0), (0, Ep - E)))

    # Embedding lookup (gather) -- glue, not the hot path.
    emb = jnp.take(emb_table, tokens, axis=0)                 # (B, T, Ep)
    # TODO(synk): nn.Dropout(p=0.5) and the inter-layer LSTM dropout are
    # stochastic in train mode; applied as identity (eval-mode semantics) here.
    B, T, _ = emb.shape
    layers = params["layers"]
    H = layers[0]["w_hh"].shape[1]
    Hp = _round_up(H, 128)                     # 128-lane-aligned gate groups
    Bp = _round_up(B, 8)                       # full f32 sublanes
    Tc = min(time_chunk, T)
    Tp = _round_up(T, Tc)

    # Single time-major transpose + padding for the entire stack.
    x = jnp.transpose(emb, (1, 0, 2))                       # (T, B, Ep)
    x = jnp.pad(x, ((0, Tp - T), (0, Bp - B), (0, 0)))      # (Tp, Bp, Ep)

    hs, cs = [], []
    for li, layer in enumerate(layers):
        in_p = Ep if li == 0 else Hp
        w_ih_t, w_hh_t, bias = _pack_layer(
            layer["w_ih"], layer["w_hh"], layer["b_ih"], layer["b_hh"], Hp, in_p)
        x, h_last, c_last = lstm_layer(
            x, w_ih_t, w_hh_t, bias, seq_len=T, time_chunk=Tc)
        hs.append(h_last[:B, :H])
        cs.append(c_last[:B, :H])

    output = jnp.transpose(x[:T, :B, :H], (1, 0, 2))        # (B, T, H)
    hidden = jnp.stack(hs, axis=0)                          # (n_layers, B, H)
    cell = jnp.stack(cs, axis=0)                            # (n_layers, B, H)
    return output, (hidden, cell)


# ----------------------------------------------------------------------------
# Pure-JAX reference (lax.scan) for a correctness check.
# ----------------------------------------------------------------------------
def encoder_forward_ref(params, tokens):
    x = jnp.take(params["embedding"], tokens, axis=0).astype(jnp.float32)
    hs, cs = [], []
    for layer in params["layers"]:
        w_ih_t = layer["w_ih"].T
        w_hh_t = layer["w_hh"].T
        bias = (layer["b_ih"] + layer["b_hh"])[None, :]
        H = layer["w_hh"].shape[1]
        B = x.shape[0]

        def step(carry, x_t, w_ih_t=w_ih_t, w_hh_t=w_hh_t, bias=bias, H=H):
            h, c = carry
            gates = x_t @ w_ih_t + h @ w_hh_t + bias
            i = jax.nn.sigmoid(gates[:, 0 * H:1 * H])
            f = jax.nn.sigmoid(gates[:, 1 * H:2 * H])
            g = jnp.tanh(gates[:, 2 * H:3 * H])
            o = jax.nn.sigmoid(gates[:, 3 * H:4 * H])
            c = f * c + i * g
            h = o * jnp.tanh(c)
            return (h, c), h

        init = (jnp.zeros((B, H), jnp.float32), jnp.zeros((B, H), jnp.float32))
        (h_last, c_last), out_t = lax.scan(step, init, jnp.transpose(x, (1, 0, 2)))
        x = jnp.transpose(out_t, (1, 0, 2))
        hs.append(h_last)
        cs.append(c_last)
    return x, (jnp.stack(hs), jnp.stack(cs))


if __name__ == "__main__":
    # Small, module-consistent shapes.
    input_dim = 16        # vocab size
    embedding_dim = 32
    hidden_dim = 32
    n_layers = 2
    batch = 2
    seq_len = 8

    key = jax.random.PRNGKey(0)
    pkey, tkey = jax.random.split(key)
    params = init_encoder_params(pkey, input_dim, embedding_dim, hidden_dim, n_layers)
    tokens = jax.random.randint(tkey, (batch, seq_len), 0, input_dim, dtype=jnp.int32)

    output, (hidden, cell) = jax.jit(encoder_forward)(params, tokens)
    jax.block_until_ready((output, hidden, cell))

    # Sanity-check against pure-JAX reference.
    ref_out, (ref_h, ref_c) = jax.jit(encoder_forward_ref)(params, tokens)
    np.testing.assert_allclose(np.asarray(output), np.asarray(ref_out), atol=1e-5, rtol=1e-5)
    np.testing.assert_allclose(np.asarray(hidden), np.asarray(ref_h), atol=1e-5, rtol=1e-5)
    np.testing.assert_allclose(np.asarray(cell), np.asarray(ref_c), atol=1e-5, rtol=1e-5)

    assert output.shape == (batch, seq_len, hidden_dim)
    assert hidden.shape == (n_layers, batch, hidden_dim)
    assert cell.shape == (n_layers, batch, hidden_dim)
    print("KERNEL_OK")
</pallas_src>

<mosaic_0001>
module attributes {stable_mosaic.version = 11 : i64} {
  func.func @lstm_layer_kernel(%arg0: i32, %arg1: memref<8x8x128xf32, #tpu.memory_space<vmem>>, %arg2: memref<128x512xf32, #tpu.memory_space<vmem>>, %arg3: memref<128x512xf32, #tpu.memory_space<vmem>>, %arg4: memref<1x512xf32, #tpu.memory_space<vmem>>, %arg5: memref<8x8x128xf32, #tpu.memory_space<vmem>>, %arg6: memref<8x128xf32, #tpu.memory_space<vmem>>, %arg7: memref<8x128xf32, #tpu.memory_space<vmem>>, %arg8: memref<8x128xf32, #tpu.memory_space<vmem>>, %arg9: memref<8x128xf32, #tpu.memory_space<vmem>>, %arg10: memref<64x512xf32, #tpu.memory_space<vmem>>) attributes {dimension_semantics = [#tpu.dimension_semantics<arbitrary>], iteration_bounds = array<i64: 1>, scalar_prefetch = 0 : i64, scratch_operands = 3 : i64, tpu.core_type = #tpu.core_type<tc>, window_params = [{transform_indices = @transform_0, window_bounds = array<i64: 8, 8, 128>}, {pipeline_mode = #tpu.pipeline_mode<synchronous>, transform_indices = @transform_1, window_bounds = array<i64: 128, 512>}, {pipeline_mode = #tpu.pipeline_mode<synchronous>, transform_indices = @transform_2, window_bounds = array<i64: 128, 512>}, {pipeline_mode = #tpu.pipeline_mode<synchronous>, transform_indices = @transform_3, window_bounds = array<i64: 1, 512>}, {transform_indices = @transform_4, window_bounds = array<i64: 8, 8, 128>}, {pipeline_mode = #tpu.pipeline_mode<synchronous>, transform_indices = @transform_5, window_bounds = array<i64: 8, 128>}, {pipeline_mode = #tpu.pipeline_mode<synchronous>, transform_indices = @transform_6, window_bounds = array<i64: 8, 128>}]} {
    %c0_i32 = arith.constant 0 : i32
    %0 = arith.cmpi eq, %arg0, %c0_i32 : i32
    %1 = arith.extui %0 : i1 to i32
    %c0_i32_0 = arith.constant 0 : i32
    %2 = arith.cmpi ne, %1, %c0_i32_0 : i32
    scf.if %2 {
      %cst_88 = arith.constant 0.000000e+00 : f32
      %298 = vector.broadcast %cst_88 : f32 to vector<8x128xf32>
      %c0_89 = arith.constant 0 : index
      %c0_90 = arith.constant 0 : index
      %299 = vector.load %arg8[%c0_89, %c0_90] : memref<8x128xf32, #tpu.memory_space<vmem>>, vector<8x128xf32>
      tpu.vector_store %arg8[%c0_89, %c0_90], %298 {strides = array<i32>} : memref<8x128xf32, #tpu.memory_space<vmem>>, vector<8x128xf32>,
      %cst_91 = arith.constant 0.000000e+00 : f32
      %300 = vector.broadcast %cst_91 : f32 to vector<8x128xf32>
      %c0_92 = arith.constant 0 : index
      %c0_93 = arith.constant 0 : index
      %301 = vector.load %arg9[%c0_92, %c0_93] : memref<8x128xf32, #tpu.memory_space<vmem>>, vector<8x128xf32>
      tpu.vector_store %arg9[%c0_92, %c0_93], %300 {strides = array<i32>} : memref<8x128xf32, #tpu.memory_space<vmem>>, vector<8x128xf32>,
    } else {
    }
    %c0 = arith.constant 0 : index
    %c0_1 = arith.constant 0 : index
    %c0_2 = arith.constant 0 : index
    %3 = vector.load %arg1[%c0, %c0_1, %c0_2] : memref<8x8x128xf32, #tpu.memory_space<vmem>>, vector<8x8x128xf32>
    %4 = vector.shape_cast %3 : vector<8x8x128xf32> to vector<64x128xf32>
    %c0_3 = arith.constant 0 : index
    %c0_4 = arith.constant 0 : index
    %5 = vector.load %arg2[%c0_3, %c0_4] : memref<128x512xf32, #tpu.memory_space<vmem>>, vector<128x512xf32>
    %cst = arith.constant dense<0.000000e+00> : vector<64x512xf32>
    %6 = tpu.matmul %4, %5, %cst {dimension_numbers = #tpu.dot_dimension_numbers<[1], [0], [0], [1], [0, 0, 1, 1], [], []>} : vector<64x128xf32>, vector<128x512xf32>, vector<64x512xf32> -> vector<64x512xf32>
    %c0_5 = arith.constant 0 : index
    %c0_6 = arith.constant 0 : index
    %7 = vector.load %arg4[%c0_5, %c0_6] : memref<1x512xf32, #tpu.memory_space<vmem>>, vector<1x512xf32>
    %8 = vector.broadcast %7 : vector<1x512xf32> to vector<64x512xf32>
    %9 = arith.addf %6, %8 : vector<64x512xf32>
    %c0_7 = arith.constant 0 : index
    %c0_8 = arith.constant 0 : index
    %10 = vector.load %arg10[%c0_7, %c0_8] : memref<64x512xf32, #tpu.memory_space<vmem>>, vector<64x512xf32>
    tpu.vector_store %arg10[%c0_7, %c0_8], %9 {strides = array<i32>} : memref<64x512xf32, #tpu.memory_space<vmem>>, vector<64x512xf32>,
    %c0_9 = arith.constant 0 : index
    %c0_10 = arith.constant 0 : index
    %11 = vector.load %arg3[%c0_9, %c0_10] : memref<128x512xf32, #tpu.memory_space<vmem>>, vector<128x512xf32>
    %c0_11 = arith.constant 0 : index
    %c0_12 = arith.constant 0 : index
    %12 = vector.load %arg8[%c0_11, %c0_12] : memref<8x128xf32, #tpu.memory_space<vmem>>, vector<8x128xf32>
    %c0_13 = arith.constant 0 : index
    %c0_14 = arith.constant 0 : index
    %13 = vector.load %arg9[%c0_13, %c0_14] : memref<8x128xf32, #tpu.memory_space<vmem>>, vector<8x128xf32>
    %c0_i32_15 = arith.constant 0 : i32
    %c8_i32 = arith.constant 8 : i32
    %14 = arith.muli %c0_i32_15, %c8_i32 : i32
    %15 = tpu.assume_multiple %14, 8 : i32
    %16 = arith.index_cast %15 : i32 to index
    %c0_16 = arith.constant 0 : index
    %17 = vector.load %arg10[%16, %c0_16] : memref<64x512xf32, #tpu.memory_space<vmem>>, vector<8x512xf32>
    %cst_17 = arith.constant dense<0.000000e+00> : vector<8x512xf32>
    %18 = tpu.matmul %12, %11, %cst_17 {dimension_numbers = #tpu.dot_dimension_numbers<[1], [0], [0], [1], [0, 0, 1, 1], [], []>} : vector<8x128xf32>, vector<128x512xf32>, vector<8x512xf32> -> vector<8x512xf32>
    %19 = arith.addf %17, %18 : vector<8x512xf32>
    %20 = vector.extract_strided_slice %19 {offsets = [0, 0], sizes = [8, 128], strides = [1, 1]} : vector<8x512xf32> to vector<8x128xf32>
    %21 = arith.negf %20 : vector<8x128xf32>
    %22 = math.exp %21 : vector<8x128xf32>
    %cst_18 = arith.constant 1.000000e+00 : f32
    %23 = vector.broadcast %cst_18 : f32 to vector<8x128xf32>
    %24 = arith.addf %23, %22 : vector<8x128xf32>
    %25 = arith.divf %23, %24 : vector<8x128xf32>
    %26 = vector.extract_strided_slice %19 {offsets = [0, 128], sizes = [8, 128], strides = [1, 1]} : vector<8x512xf32> to vector<8x128xf32>
    %27 = arith.negf %26 : vector<8x128xf32>
    %28 = math.exp %27 : vector<8x128xf32>
    %cst_19 = arith.constant 1.000000e+00 : f32
    %29 = vector.broadcast %cst_19 : f32 to vector<8x128xf32>
    %30 = arith.addf %29, %28 : vector<8x128xf32>
    %31 = arith.divf %29, %30 : vector<8x128xf32>
    %32 = vector.extract_strided_slice %19 {offsets = [0, 256], sizes = [8, 128], strides = [1, 1]} : vector<8x512xf32> to vector<8x128xf32>
    %33 = math.tanh %32 : vector<8x128xf32>
    %34 = vector.extract_strided_slice %19 {offsets = [0, 384], sizes = [8, 128], strides = [1, 1]} : vector<8x512xf32> to vector<8x128xf32>
    %35 = arith.negf %34 : vector<8x128xf32>
    %36 = math.exp %35 : vector<8x128xf32>
    %cst_20 = arith.constant 1.000000e+00 : f32
    %37 = vector.broadcast %cst_20 : f32 to vector<8x128xf32>
    %38 = arith.addf %37, %36 : vector<8x128xf32>
    %39 = arith.divf %37, %38 : vector<8x128xf32>
    %40 = arith.mulf %31, %13 : vector<8x128xf32>
    %41 = arith.mulf %25, %33 : vector<8x128xf32>
    %42 = arith.addf %40, %41 : vector<8x128xf32>
    %43 = math.tanh %42 : vector<8x128xf32>
    %44 = arith.mulf %39, %43 : vector<8x128xf32>
    %45 = arith.index_cast %c0_i32_15 : i32 to index
    %c0_21 = arith.constant 0 : index
    %c0_22 = arith.constant 0 : index
    %46 = vector.load %arg5[%45, %c0_21, %c0_22] : memref<8x8x128xf32, #tpu.memory_space<vmem>>, vector<1x8x128xf32>
    %47 = vector.shape_cast %46 : vector<1x8x128xf32> to vector<8x128xf32>
    %48 = vector.shape_cast %44 : vector<8x128xf32> to vector<1x8x128xf32>
    tpu.vector_store %arg5[%45, %c0_21, %c0_22], %48 {strides = array<i32>} : memref<8x8x128xf32, #tpu.memory_space<vmem>>, vector<1x8x128xf32>,
    %c1_i32 = arith.constant 1 : i32
    %c8_i32_23 = arith.constant 8 : i32
    %49 = arith.muli %c1_i32, %c8_i32_23 : i32
    %50 = tpu.assume_multiple %49, 8 : i32
    %51 = arith.index_cast %50 : i32 to index
    %c0_24 = arith.constant 0 : index
    %52 = vector.load %arg10[%51, %c0_24] : memref<64x512xf32, #tpu.memory_space<vmem>>, vector<8x512xf32>
    %cst_25 = arith.constant dense<0.000000e+00> : vector<8x512xf32>
    %53 = tpu.matmul %44, %11, %cst_25 {dimension_numbers = #tpu.dot_dimension_numbers<[1], [0], [0], [1], [0, 0, 1, 1], [], []>} : vector<8x128xf32>, vector<128x512xf32>, vector<8x512xf32> -> vector<8x512xf32>
    %54 = arith.addf %52, %53 : vector<8x512xf32>
    %55 = vector.extract_strided_slice %54 {offsets = [0, 0], sizes = [8, 128], strides = [1, 1]} : vector<8x512xf32> to vector<8x128xf32>
    %56 = arith.negf %55 : vector<8x128xf32>
    %57 = math.exp %56 : vector<8x128xf32>
    %cst_26 = arith.constant 1.000000e+00 : f32
    %58 = vector.broadcast %cst_26 : f32 to vector<8x128xf32>
    %59 = arith.addf %58, %57 : vector<8x128xf32>
    %60 = arith.divf %58, %59 : vector<8x128xf32>
    %61 = vector.extract_strided_slice %54 {offsets = [0, 128], sizes = [8, 128], strides = [1, 1]} : vector<8x512xf32> to vector<8x128xf32>
    %62 = arith.negf %61 : vector<8x128xf32>
    %63 = math.exp %62 : vector<8x128xf32>
    %cst_27 = arith.constant 1.000000e+00 : f32
    %64 = vector.broadcast %cst_27 : f32 to vector<8x128xf32>
    %65 = arith.addf %64, %63 : vector<8x128xf32>
    %66 = arith.divf %64, %65 : vector<8x128xf32>
    %67 = vector.extract_strided_slice %54 {offsets = [0, 256], sizes = [8, 128], strides = [1, 1]} : vector<8x512xf32> to vector<8x128xf32>
    %68 = math.tanh %67 : vector<8x128xf32>
    %69 = vector.extract_strided_slice %54 {offsets = [0, 384], sizes = [8, 128], strides = [1, 1]} : vector<8x512xf32> to vector<8x128xf32>
    %70 = arith.negf %69 : vector<8x128xf32>
    %71 = math.exp %70 : vector<8x128xf32>
    %cst_28 = arith.constant 1.000000e+00 : f32
    %72 = vector.broadcast %cst_28 : f32 to vector<8x128xf32>
    %73 = arith.addf %72, %71 : vector<8x128xf32>
    %74 = arith.divf %72, %73 : vector<8x128xf32>
    %75 = arith.mulf %66, %42 : vector<8x128xf32>
    %76 = arith.mulf %60, %68 : vector<8x128xf32>
    %77 = arith.addf %75, %76 : vector<8x128xf32>
    %78 = math.tanh %77 : vector<8x128xf32>
    %79 = arith.mulf %74, %78 : vector<8x128xf32>
    %80 = arith.index_cast %c1_i32 : i32 to index
    %c0_29 = arith.constant 0 : index
    %c0_30 = arith.constant 0 : index
    %81 = vector.load %arg5[%80, %c0_29, %c0_30] : memref<8x8x128xf32, #tpu.memory_space<vmem>>, vector<1x8x128xf32>
    %82 = vector.shape_cast %81 : vector<1x8x128xf32> to vector<8x128xf32>
    %83 = vector.shape_cast %79 : vector<8x128xf32> to vector<1x8x128xf32>
    tpu.vector_store %arg5[%80, %c0_29, %c0_30], %83 {strides = array<i32>} : memref<8x8x128xf32, #tpu.memory_space<vmem>>, vector<1x8x128xf32>,
    %c2_i32 = arith.constant 2 : i32
    %c8_i32_31 = arith.constant 8 : i32
    %84 = arith.muli %c2_i32, %c8_i32_31 : i32
    %85 = tpu.assume_multiple %84, 8 : i32
    %86 = arith.index_cast %85 : i32 to index
    %c0_32 = arith.constant 0 : index
    %87 = vector.load %arg10[%86, %c0_32] : memref<64x512xf32, #tpu.memory_space<vmem>>, vector<8x512xf32>
    %cst_33 = arith.constant dense<0.000000e+00> : vector<8x512xf32>
    %88 = tpu.matmul %79, %11, %cst_33 {dimension_numbers = #tpu.dot_dimension_numbers<[1], [0], [0], [1], [0, 0, 1, 1], [], []>} : vector<8x128xf32>, vector<128x512xf32>, vector<8x512xf32> -> vector<8x512xf32>
    %89 = arith.addf %87, %88 : vector<8x512xf32>
    %90 = vector.extract_strided_slice %89 {offsets = [0, 0], sizes = [8, 128], strides = [1, 1]} : vector<8x512xf32> to vector<8x128xf32>
    %91 = arith.negf %90 : vector<8x128xf32>
    %92 = math.exp %91 : vector<8x128xf32>
    %cst_34 = arith.constant 1.000000e+00 : f32
    %93 = vector.broadcast %cst_34 : f32 to vector<8x128xf32>
    %94 = arith.addf %93, %92 : vector<8x128xf32>
    %95 = arith.divf %93, %94 : vector<8x128xf32>
    %96 = vector.extract_strided_slice %89 {offsets = [0, 128], sizes = [8, 128], strides = [1, 1]} : vector<8x512xf32> to vector<8x128xf32>
    %97 = arith.negf %96 : vector<8x128xf32>
    %98 = math.exp %97 : vector<8x128xf32>
    %cst_35 = arith.constant 1.000000e+00 : f32
    %99 = vector.broadcast %cst_35 : f32 to vector<8x128xf32>
    %100 = arith.addf %99, %98 : vector<8x128xf32>
    %101 = arith.divf %99, %100 : vector<8x128xf32>
    %102 = vector.extract_strided_slice %89 {offsets = [0, 256], sizes = [8, 128], strides = [1, 1]} : vector<8x512xf32> to vector<8x128xf32>
    %103 = math.tanh %102 : vector<8x128xf32>
    %104 = vector.extract_strided_slice %89 {offsets = [0, 384], sizes = [8, 128], strides = [1, 1]} : vector<8x512xf32> to vector<8x128xf32>
    %105 = arith.negf %104 : vector<8x128xf32>
    %106 = math.exp %105 : vector<8x128xf32>
    %cst_36 = arith.constant 1.000000e+00 : f32
    %107 = vector.broadcast %cst_36 : f32 to vector<8x128xf32>
    %108 = arith.addf %107, %106 : vector<8x128xf32>
    %109 = arith.divf %107, %108 : vector<8x128xf32>
    %110 = arith.mulf %101, %77 : vector<8x128xf32>
    %111 = arith.mulf %95, %103 : vector<8x128xf32>
    %112 = arith.addf %110, %111 : vector<8x128xf32>
    %113 = math.tanh %112 : vector<8x128xf32>
    %114 = arith.mulf %109, %113 : vector<8x128xf32>
    %115 = arith.index_cast %c2_i32 : i32 to index
    %c0_37 = arith.constant 0 : index
    %c0_38 = arith.constant 0 : index
    %116 = vector.load %arg5[%115, %c0_37, %c0_38] : memref<8x8x128xf32, #tpu.memory_space<vmem>>, vector<1x8x128xf32>
    %117 = vector.shape_cast %116 : vector<1x8x128xf32> to vector<8x128xf32>
    %118 = vector.shape_cast %114 : vector<8x128xf32> to vector<1x8x128xf32>
    tpu.vector_store %arg5[%115, %c0_37, %c0_38], %118 {strides = array<i32>} : memref<8x8x128xf32, #tpu.memory_space<vmem>>, vector<1x8x128xf32>,
    %c3_i32 = arith.constant 3 : i32
    %c8_i32_39 = arith.constant 8 : i32
    %119 = arith.muli %c3_i32, %c8_i32_39 : i32
    %120 = tpu.assume_multiple %119, 8 : i32
    %121 = arith.index_cast %120 : i32 to index
    %c0_40 = arith.constant 0 : index
    %122 = vector.load %arg10[%121, %c0_40] : memref<64x512xf32, #tpu.memory_space<vmem>>, vector<8x512xf32>
    %cst_41 = arith.constant dense<0.000000e+00> : vector<8x512xf32>
    %123 = tpu.matmul %114, %11, %cst_41 {dimension_numbers = #tpu.dot_dimension_numbers<[1], [0], [0], [1], [0, 0, 1, 1], [], []>} : vector<8x128xf32>, vector<128x512xf32>, vector<8x512xf32> -> vector<8x512xf32>
    %124 = arith.addf %122, %123 : vector<8x512xf32>
    %125 = vector.extract_strided_slice %124 {offsets = [0, 0], sizes = [8, 128], strides = [1, 1]} : vector<8x512xf32> to vector<8x128xf32>
    %126 = arith.negf %125 : vector<8x128xf32>
    %127 = math.exp %126 : vector<8x128xf32>
    %cst_42 = arith.constant 1.000000e+00 : f32
    %128 = vector.broadcast %cst_42 : f32 to vector<8x128xf32>
    %129 = arith.addf %128, %127 : vector<8x128xf32>
    %130 = arith.divf %128, %129 : vector<8x128xf32>
    %131 = vector.extract_strided_slice %124 {offsets = [0, 128], sizes = [8, 128], strides = [1, 1]} : vector<8x512xf32> to vector<8x128xf32>
    %132 = arith.negf %131 : vector<8x128xf32>
    %133 = math.exp %132 : vector<8x128xf32>
    %cst_43 = arith.constant 1.000000e+00 : f32
    %134 = vector.broadcast %cst_43 : f32 to vector<8x128xf32>
    %135 = arith.addf %134, %133 : vector<8x128xf32>
    %136 = arith.divf %134, %135 : vector<8x128xf32>
    %137 = vector.extract_strided_slice %124 {offsets = [0, 256], sizes = [8, 128], strides = [1, 1]} : vector<8x512xf32> to vector<8x128xf32>
    %138 = math.tanh %137 : vector<8x128xf32>
    %139 = vector.extract_strided_slice %124 {offsets = [0, 384], sizes = [8, 128], strides = [1, 1]} : vector<8x512xf32> to vector<8x128xf32>
    %140 = arith.negf %139 : vector<8x128xf32>
    %141 = math.exp %140 : vector<8x128xf32>
    %cst_44 = arith.constant 1.000000e+00 : f32
    %142 = vector.broadcast %cst_44 : f32 to vector<8x128xf32>
    %143 = arith.addf %142, %141 : vector<8x128xf32>
    %144 = arith.divf %142, %143 : vector<8x128xf32>
    %145 = arith.mulf %136, %112 : vector<8x128xf32>
    %146 = arith.mulf %130, %138 : vector<8x128xf32>
    %147 = arith.addf %145, %146 : vector<8x128xf32>
    %148 = math.tanh %147 : vector<8x128xf32>
    %149 = arith.mulf %144, %148 : vector<8x128xf32>
    %150 = arith.index_cast %c3_i32 : i32 to index
    %c0_45 = arith.constant 0 : index
    %c0_46 = arith.constant 0 : index
    %151 = vector.load %arg5[%150, %c0_45, %c0_46] : memref<8x8x128xf32, #tpu.memory_space<vmem>>, vector<1x8x128xf32>
    %152 = vector.shape_cast %151 : vector<1x8x128xf32> to vector<8x128xf32>
    %153 = vector.shape_cast %149 : vector<8x128xf32> to vector<1x8x128xf32>
    tpu.vector_store %arg5[%150, %c0_45, %c0_46], %153 {strides = array<i32>} : memref<8x8x128xf32, #tpu.memory_space<vmem>>, vector<1x8x128xf32>,
    %c4_i32 = arith.constant 4 : i32
    %c8_i32_47 = arith.constant 8 : i32
    %154 = arith.muli %c4_i32, %c8_i32_47 : i32
    %155 = tpu.assume_multiple %154, 8 : i32
    %156 = arith.index_cast %155 : i32 to index
    %c0_48 = arith.constant 0 : index
    %157 = vector.load %arg10[%156, %c0_48] : memref<64x512xf32, #tpu.memory_space<vmem>>, vector<8x512xf32>
    %cst_49 = arith.constant dense<0.000000e+00> : vector<8x512xf32>
    %158 = tpu.matmul %149, %11, %cst_49 {dimension_numbers = #tpu.dot_dimension_numbers<[1], [0], [0], [1], [0, 0, 1, 1], [], []>} : vector<8x128xf32>, vector<128x512xf32>, vector<8x512xf32> -> vector<8x512xf32>
    %159 = arith.addf %157, %158 : vector<8x512xf32>
    %160 = vector.extract_strided_slice %159 {offsets = [0, 0], sizes = [8, 128], strides = [1, 1]} : vector<8x512xf32> to vector<8x128xf32>
    %161 = arith.negf %160 : vector<8x128xf32>
    %162 = math.exp %161 : vector<8x128xf32>
    %cst_50 = arith.constant 1.000000e+00 : f32
    %163 = vector.broadcast %cst_50 : f32 to vector<8x128xf32>
    %164 = arith.addf %163, %162 : vector<8x128xf32>
    %165 = arith.divf %163, %164 : vector<8x128xf32>
    %166 = vector.extract_strided_slice %159 {offsets = [0, 128], sizes = [8, 128], strides = [1, 1]} : vector<8x512xf32> to vector<8x128xf32>
    %167 = arith.negf %166 : vector<8x128xf32>
    %168 = math.exp %167 : vector<8x128xf32>
    %cst_51 = arith.constant 1.000000e+00 : f32
    %169 = vector.broadcast %cst_51 : f32 to vector<8x128xf32>
    %170 = arith.addf %169, %168 : vector<8x128xf32>
    %171 = arith.divf %169, %170 : vector<8x128xf32>
    %172 = vector.extract_strided_slice %159 {offsets = [0, 256], sizes = [8, 128], strides = [1, 1]} : vector<8x512xf32> to vector<8x128xf32>
    %173 = math.tanh %172 : vector<8x128xf32>
    %174 = vector.extract_strided_slice %159 {offsets = [0, 384], sizes = [8, 128], strides = [1, 1]} : vector<8x512xf32> to vector<8x128xf32>
    %175 = arith.negf %174 : vector<8x128xf32>
    %176 = math.exp %175 : vector<8x128xf32>
    %cst_52 = arith.constant 1.000000e+00 : f32
    %177 = vector.broadcast %cst_52 : f32 to vector<8x128xf32>
    %178 = arith.addf %177, %176 : vector<8x128xf32>
    %179 = arith.divf %177, %178 : vector<8x128xf32>
    %180 = arith.mulf %171, %147 : vector<8x128xf32>
    %181 = arith.mulf %165, %173 : vector<8x128xf32>
    %182 = arith.addf %180, %181 : vector<8x128xf32>
    %183 = math.tanh %182 : vector<8x128xf32>
    %184 = arith.mulf %179, %183 : vector<8x128xf32>
    %185 = arith.index_cast %c4_i32 : i32 to index
    %c0_53 = arith.constant 0 : index
    %c0_54 = arith.constant 0 : index
    %186 = vector.load %arg5[%185, %c0_53, %c0_54] : memref<8x8x128xf32, #tpu.memory_space<vmem>>, vector<1x8x128xf32>
    %187 = vector.shape_cast %186 : vector<1x8x128xf32> to vector<8x128xf32>
    %188 = vector.shape_cast %184 : vector<8x128xf32> to vector<1x8x128xf32>
    tpu.vector_store %arg5[%185, %c0_53, %c0_54], %188 {strides = array<i32>} : memref<8x8x128xf32, #tpu.memory_space<vmem>>, vector<1x8x128xf32>,
    %c5_i32 = arith.constant 5 : i32
    %c8_i32_55 = arith.constant 8 : i32
    %189 = arith.muli %c5_i32, %c8_i32_55 : i32
    %190 = tpu.assume_multiple %189, 8 : i32
    %191 = arith.index_cast %190 : i32 to index
    %c0_56 = arith.constant 0 : index
    %192 = vector.load %arg10[%191, %c0_56] : memref<64x512xf32, #tpu.memory_space<vmem>>, vector<8x512xf32>
    %cst_57 = arith.constant dense<0.000000e+00> : vector<8x512xf32>
    %193 = tpu.matmul %184, %11, %cst_57 {dimension_numbers = #tpu.dot_dimension_numbers<[1], [0], [0], [1], [0, 0, 1, 1], [], []>} : vector<8x128xf32>, vector<128x512xf32>, vector<8x512xf32> -> vector<8x512xf32>
    %194 = arith.addf %192, %193 : vector<8x512xf32>
    %195 = vector.extract_strided_slice %194 {offsets = [0, 0], sizes = [8, 128], strides = [1, 1]} : vector<8x512xf32> to vector<8x128xf32>
    %196 = arith.negf %195 : vector<8x128xf32>
    %197 = math.exp %196 : vector<8x128xf32>
    %cst_58 = arith.constant 1.000000e+00 : f32
    %198 = vector.broadcast %cst_58 : f32 to vector<8x128xf32>
    %199 = arith.addf %198, %197 : vector<8x128xf32>
    %200 = arith.divf %198, %199 : vector<8x128xf32>
    %201 = vector.extract_strided_slice %194 {offsets = [0, 128], sizes = [8, 128], strides = [1, 1]} : vector<8x512xf32> to vector<8x128xf32>
    %202 = arith.negf %201 : vector<8x128xf32>
    %203 = math.exp %202 : vector<8x128xf32>
    %cst_59 = arith.constant 1.000000e+00 : f32
    %204 = vector.broadcast %cst_59 : f32 to vector<8x128xf32>
    %205 = arith.addf %204, %203 : vector<8x128xf32>
    %206 = arith.divf %204, %205 : vector<8x128xf32>
    %207 = vector.extract_strided_slice %194 {offsets = [0, 256], sizes = [8, 128], strides = [1, 1]} : vector<8x512xf32> to vector<8x128xf32>
    %208 = math.tanh %207 : vector<8x128xf32>
    %209 = vector.extract_strided_slice %194 {offsets = [0, 384], sizes = [8, 128], strides = [1, 1]} : vector<8x512xf32> to vector<8x128xf32>
    %210 = arith.negf %209 : vector<8x128xf32>
    %211 = math.exp %210 : vector<8x128xf32>
    %cst_60 = arith.constant 1.000000e+00 : f32
    %212 = vector.broadcast %cst_60 : f32 to vector<8x128xf32>
    %213 = arith.addf %212, %211 : vector<8x128xf32>
    %214 = arith.divf %212, %213 : vector<8x128xf32>
    %215 = arith.mulf %206, %182 : vector<8x128xf32>
    %216 = arith.mulf %200, %208 : vector<8x128xf32>
    %217 = arith.addf %215, %216 : vector<8x128xf32>
    %218 = math.tanh %217 : vector<8x128xf32>
    %219 = arith.mulf %214, %218 : vector<8x128xf32>
    %220 = arith.index_cast %c5_i32 : i32 to index
    %c0_61 = arith.constant 0 : index
    %c0_62 = arith.constant 0 : index
    %221 = vector.load %arg5[%220, %c0_61, %c0_62] : memref<8x8x128xf32, #tpu.memory_space<vmem>>, vector<1x8x128xf32>
    %222 = vector.shape_cast %221 : vector<1x8x128xf32> to vector<8x128xf32>
    %223 = vector.shape_cast %219 : vector<8x128xf32> to vector<1x8x128xf32>
    tpu.vector_store %arg5[%220, %c0_61, %c0_62], %223 {strides = array<i32>} : memref<8x8x128xf32, #tpu.memory_space<vmem>>, vector<1x8x128xf32>,
    %c6_i32 = arith.constant 6 : i32
    %c8_i32_63 = arith.constant 8 : i32
    %224 = arith.muli %c6_i32, %c8_i32_63 : i32
    %225 = tpu.assume_multiple %224, 8 : i32
    %226 = arith.index_cast %225 : i32 to index
    %c0_64 = arith.constant 0 : index
    %227 = vector.load %arg10[%226, %c0_64] : memref<64x512xf32, #tpu.memory_space<vmem>>, vector<8x512xf32>
    %cst_65 = arith.constant dense<0.000000e+00> : vector<8x512xf32>
    %228 = tpu.matmul %219, %11, %cst_65 {dimension_numbers = #tpu.dot_dimension_numbers<[1], [0], [0], [1], [0, 0, 1, 1], [], []>} : vector<8x128xf32>, vector<128x512xf32>, vector<8x512xf32> -> vector<8x512xf32>
    %229 = arith.addf %227, %228 : vector<8x512xf32>
    %230 = vector.extract_strided_slice %229 {offsets = [0, 0], sizes = [8, 128], strides = [1, 1]} : vector<8x512xf32> to vector<8x128xf32>
    %231 = arith.negf %230 : vector<8x128xf32>
    %232 = math.exp %231 : vector<8x128xf32>
    %cst_66 = arith.constant 1.000000e+00 : f32
    %233 = vector.broadcast %cst_66 : f32 to vector<8x128xf32>
    %234 = arith.addf %233, %232 : vector<8x128xf32>
    %235 = arith.divf %233, %234 : vector<8x128xf32>
    %236 = vector.extract_strided_slice %229 {offsets = [0, 128], sizes = [8, 128], strides = [1, 1]} : vector<8x512xf32> to vector<8x128xf32>
    %237 = arith.negf %236 : vector<8x128xf32>
    %238 = math.exp %237 : vector<8x128xf32>
    %cst_67 = arith.constant 1.000000e+00 : f32
    %239 = vector.broadcast %cst_67 : f32 to vector<8x128xf32>
    %240 = arith.addf %239, %238 : vector<8x128xf32>
    %241 = arith.divf %239, %240 : vector<8x128xf32>
    %242 = vector.extract_strided_slice %229 {offsets = [0, 256], sizes = [8, 128], strides = [1, 1]} : vector<8x512xf32> to vector<8x128xf32>
    %243 = math.tanh %242 : vector<8x128xf32>
    %244 = vector.extract_strided_slice %229 {offsets = [0, 384], sizes = [8, 128], strides = [1, 1]} : vector<8x512xf32> to vector<8x128xf32>
    %245 = arith.negf %244 : vector<8x128xf32>
    %246 = math.exp %245 : vector<8x128xf32>
    %cst_68 = arith.constant 1.000000e+00 : f32
    %247 = vector.broadcast %cst_68 : f32 to vector<8x128xf32>
    %248 = arith.addf %247, %246 : vector<8x128xf32>
    %249 = arith.divf %247, %248 : vector<8x128xf32>
    %250 = arith.mulf %241, %217 : vector<8x128xf32>
    %251 = arith.mulf %235, %243 : vector<8x128xf32>
    %252 = arith.addf %250, %251 : vector<8x128xf32>
    %253 = math.tanh %252 : vector<8x128xf32>
    %254 = arith.mulf %249, %253 : vector<8x128xf32>
    %255 = arith.index_cast %c6_i32 : i32 to index
    %c0_69 = arith.constant 0 : index
    %c0_70 = arith.constant 0 : index
    %256 = vector.load %arg5[%255, %c0_69, %c0_70] : memref<8x8x128xf32, #tpu.memory_space<vmem>>, vector<1x8x128xf32>
    %257 = vector.shape_cast %256 : vector<1x8x128xf32> to vector<8x128xf32>
    %258 = vector.shape_cast %254 : vector<8x128xf32> to vector<1x8x128xf32>
    tpu.vector_store %arg5[%255, %c0_69, %c0_70], %258 {strides = array<i32>} : memref<8x8x128xf32, #tpu.memory_space<vmem>>, vector<1x8x128xf32>,
    %c7_i32 = arith.constant 7 : i32
    %c8_i32_71 = arith.constant 8 : i32
    %259 = arith.muli %c7_i32, %c8_i32_71 : i32
    %260 = tpu.assume_multiple %259, 8 : i32
    %261 = arith.index_cast %260 : i32 to index
    %c0_72 = arith.constant 0 : index
    %262 = vector.load %arg10[%261, %c0_72] : memref<64x512xf32, #tpu.memory_space<vmem>>, vector<8x512xf32>
    %cst_73 = arith.constant dense<0.000000e+00> : vector<8x512xf32>
    %263 = tpu.matmul %254, %11, %cst_73 {dimension_numbers = #tpu.dot_dimension_numbers<[1], [0], [0], [1], [0, 0, 1, 1], [], []>} : vector<8x128xf32>, vector<128x512xf32>, vector<8x512xf32> -> vector<8x512xf32>
    %264 = arith.addf %262, %263 : vector<8x512xf32>
    %265 = vector.extract_strided_slice %264 {offsets = [0, 0], sizes = [8, 128], strides = [1, 1]} : vector<8x512xf32> to vector<8x128xf32>
    %266 = arith.negf %265 : vector<8x128xf32>
    %267 = math.exp %266 : vector<8x128xf32>
    %cst_74 = arith.constant 1.000000e+00 : f32
    %268 = vector.broadcast %cst_74 : f32 to vector<8x128xf32>
    %269 = arith.addf %268, %267 : vector<8x128xf32>
    %270 = arith.divf %268, %269 : vector<8x128xf32>
    %271 = vector.extract_strided_slice %264 {offsets = [0, 128], sizes = [8, 128], strides = [1, 1]} : vector<8x512xf32> to vector<8x128xf32>
    %272 = arith.negf %271 : vector<8x128xf32>
    %273 = math.exp %272 : vector<8x128xf32>
    %cst_75 = arith.constant 1.000000e+00 : f32
    %274 = vector.broadcast %cst_75 : f32 to vector<8x128xf32>
    %275 = arith.addf %274, %273 : vector<8x128xf32>
    %276 = arith.divf %274, %275 : vector<8x128xf32>
    %277 = vector.extract_strided_slice %264 {offsets = [0, 256], sizes = [8, 128], strides = [1, 1]} : vector<8x512xf32> to vector<8x128xf32>
    %278 = math.tanh %277 : vector<8x128xf32>
    %279 = vector.extract_strided_slice %264 {offsets = [0, 384], sizes = [8, 128], strides = [1, 1]} : vector<8x512xf32> to vector<8x128xf32>
    %280 = arith.negf %279 : vector<8x128xf32>
    %281 = math.exp %280 : vector<8x128xf32>
    %cst_76 = arith.constant 1.000000e+00 : f32
    %282 = vector.broadcast %cst_76 : f32 to vector<8x128xf32>
    %283 = arith.addf %282, %281 : vector<8x128xf32>
    %284 = arith.divf %282, %283 : vector<8x128xf32>
    %285 = arith.mulf %276, %252 : vector<8x128xf32>
    %286 = arith.mulf %270, %278 : vector<8x128xf32>
    %287 = arith.addf %285, %286 : vector<8x128xf32>
    %288 = math.tanh %287 : vector<8x128xf32>
    %289 = arith.mulf %284, %288 : vector<8x128xf32>
    %290 = arith.index_cast %c7_i32 : i32 to index
    %c0_77 = arith.constant 0 : index
    %c0_78 = arith.constant 0 : index
    %291 = vector.load %arg5[%290, %c0_77, %c0_78] : memref<8x8x128xf32, #tpu.memory_space<vmem>>, vector<1x8x128xf32>
    %292 = vector.shape_cast %291 : vector<1x8x128xf32> to vector<8x128xf32>
    %293 = vector.shape_cast %289 : vector<8x128xf32> to vector<1x8x128xf32>
    tpu.vector_store %arg5[%290, %c0_77, %c0_78], %293 {strides = array<i32>} : memref<8x8x128xf32, #tpu.memory_space<vmem>>, vector<1x8x128xf32>,
    %c8_i32_79 = arith.constant 8 : i32
    %c0_80 = arith.constant 0 : index
    %c0_81 = arith.constant 0 : index
    %294 = vector.load %arg8[%c0_80, %c0_81] : memref<8x128xf32, #tpu.memory_space<vmem>>, vector<8x128xf32>
    tpu.vector_store %arg8[%c0_80, %c0_81], %289 {strides = array<i32>} : memref<8x128xf32, #tpu.memory_space<vmem>>, vector<8x128xf32>,
    %c0_82 = arith.constant 0 : index
    %c0_83 = arith.constant 0 : index
    %295 = vector.load %arg9[%c0_82, %c0_83] : memref<8x128xf32, #tpu.memory_space<vmem>>, vector<8x128xf32>
    tpu.vector_store %arg9[%c0_82, %c0_83], %287 {strides = array<i32>} : memref<8x128xf32, #tpu.memory_space<vmem>>, vector<8x128xf32>,
    %c0_84 = arith.constant 0 : index
    %c0_85 = arith.constant 0 : index
    %296 = vector.load %arg6[%c0_84, %c0_85] : memref<8x128xf32, #tpu.memory_space<vmem>>, vector<8x128xf32>
    tpu.vector_store %arg6[%c0_84, %c0_85], %289 {strides = array<i32>} : memref<8x128xf32, #tpu.memory_space<vmem>>, vector<8x128xf32>,
    %c0_86 = arith.constant 0 : index
    %c0_87 = arith.constant 0 : index
    %297 = vector.load %arg7[%c0_86, %c0_87] : memref<8x128xf32, #tpu.memory_space<vmem>>, vector<8x128xf32>
    tpu.vector_store %arg7[%c0_86, %c0_87], %287 {strides = array<i32>} : memref<8x128xf32, #tpu.memory_space<vmem>>, vector<8x128xf32>,
    return
  }
  func.func @transform_0(%arg0: i32) -> (i32, i32, i32) {
    %c0_i32 = arith.constant 0 : i32
    %c0_i32_0 = arith.constant 0 : i32
    %c0_i32_1 = arith.constant 0 : i32
    return %arg0, %c0_i32, %c0_i32_0 : i32, i32, i32
  }
  func.func @transform_1(%arg0: i32) -> (i32, i32) {
    %c0_i32 = arith.constant 0 : i32
    %c0_i32_0 = arith.constant 0 : i32
    %c0_i32_1 = arith.constant 0 : i32
    return %c0_i32, %c0_i32_0 : i32, i32
  }
  func.func @transform_2(%arg0: i32) -> (i32, i32) {
    %c0_i32 = arith.constant 0 : i32
    %c0_i32_0 = arith.constant 0 : i32
    %c0_i32_1 = arith.constant 0 : i32
    return %c0_i32, %c0_i32_0 : i32, i32
  }
  func.func @transform_3(%arg0: i32) -> (i32, i32) {
    %c0_i32 = arith.constant 0 : i32
    %c0_i32_0 = arith.constant 0 : i32
    %c0_i32_1 = arith.constant 0 : i32
    return %c0_i32, %c0_i32_0 : i32, i32
  }
  func.func @transform_4(%arg0: i32) -> (i32, i32, i32) {
    %c0_i32 = arith.constant 0 : i32
    %c0_i32_0 = arith.constant 0 : i32
    %c0_i32_1 = arith.constant 0 : i32
    return %arg0, %c0_i32, %c0_i32_0 : i32, i32, i32
  }
  func.func @transform_5(%arg0: i32) -> (i32, i32) {
    %c0_i32 = arith.constant 0 : i32
    %c0_i32_0 = arith.constant 0 : i32
    %c0_i32_1 = arith.constant 0 : i32
    return %c0_i32, %c0_i32_0 : i32, i32
  }
  func.func @transform_6(%arg0: i32) -> (i32, i32) {
    %c0_i32 = arith.constant 0 : i32
    %c0_i32_0 = arith.constant 0 : i32
    %c0_i32_1 = arith.constant 0 : i32
    return %c0_i32, %c0_i32_0 : i32, i32
  }
}

</mosaic_0001>

<llo_original>
// kernel: encoder_forward.2
$region0: #{encoder_forward.2}
  #allocation0 [shape = 'u32[]', space=smem, size = 0x4, offset = 0x4, fixed_abs, tag = 'smem constant byte address 0x4 - core index']
  #allocation1 [shape = 'u32[144,128]{1,0:T(1,128)}', space=vmem, size = 0x12000, scoped, tag = 'internal scratch']
  #allocation2 [shape = 'f32[8,128]{1,0:T(8,128)}', space=vmem, size = 0x1000, scoped, tag = 'scratch operand']
  #allocation3 [shape = 'f32[8,128]{1,0:T(8,128)}', space=vmem, size = 0x1000, scoped, tag = 'scratch operand']
  #allocation4 [shape = 'f32[64,512]{1,0:T(8,128)}', space=vmem, size = 0x20000, scoped, tag = 'scratch operand']
  %s0 = inlined_call_operand.vmem [shape: f32[8,8,128], index: 0, kind: input, shape index: {}]
  %s1 = inlined_call_operand.vmem [shape: f32[128,512], index: 1, kind: input, shape index: {}]
  %s2 = inlined_call_operand.vmem [shape: f32[128,512], index: 2, kind: input, shape index: {}]
  %s3 = inlined_call_operand.vmem [shape: f32[1,512], index: 3, kind: input, shape index: {}]
  %s4 = inlined_call_operand.vmem [shape: f32[8,8,128], index: 4, kind: output, shape index: {0}]
  %s5 = inlined_call_operand.vmem [shape: f32[8,128], index: 5, kind: output, shape index: {1}]
  %s6 = inlined_call_operand.vmem [shape: f32[8,128], index: 6, kind: output, shape index: {2}]
  %7 = xla_tuple %s4, %s5, %s6
  %s8 = sld [smem:[#allocation0]]
  $region46: #{encoder_forward.2} parent=0
    _
  %s10 = ssub.s32 1, %s8
  %s11 = scalar_select 0, %s10, %s8
  // Predicated region
  $region2: #{encoder_forward.2} parent=0 // pred_check
    _
  $region3: #{encoder_forward.2} parent=0 // pred_check_branch
    %13 = sbr.rel (0) target = $region5
  $region4: #{encoder_forward.2} parent=0 // pred_region
    _
  $region5: #{encoder_forward.2} parent=0 // pred_fallthru
    _
  // Predicated region
  $region6: #{encoder_forward.2} parent=0 // pred_check
    _
  $region7: #{encoder_forward.2} parent=0 // pred_check_branch
    %15 = sbr.rel (0) target = $region9
  $region8: #{encoder_forward.2} parent=0 // pred_region
    _
  $region9: #{encoder_forward.2} parent=0 // pred_fallthru
    _
  // Predicated region
  $region10: #{encoder_forward.2} parent=0 // pred_check
    _
  $region11: #{encoder_forward.2} parent=0 // pred_check_branch
    %17 = sbr.rel (0) target = $region13
  $region12: #{encoder_forward.2} parent=0 // pred_region
    _
  $region13: #{encoder_forward.2} parent=0 // pred_fallthru
    _
  // Predicated region
  $region14: #{encoder_forward.2} parent=0 // pred_check
    _
  $region15: #{encoder_forward.2} parent=0 // pred_check_branch
    %19 = sbr.rel (0) target = $region17
  $region16: #{encoder_forward.2} parent=0 // pred_region
    _
  $region17: #{encoder_forward.2} parent=0 // pred_fallthru
    _
  %p20 = scmp.eq.s32.totalorder 0, 0
  // Predicated region
  $region18: #{encoder_forward.2} parent=0 // pred_check
    %p21 = pneg %p20
  $region19: #{encoder_forward.2} parent=0 // pred_check_branch
    %23 = sbr.rel (%p21) target = $region21
  $region20: #{encoder_forward.2} parent=0 // pred_region
    %24 = vst [vmem:[#allocation2] sm:$0xff] 0.0
    %25 = vst [vmem:[#allocation3] sm:$0xff] 0.0
  $region21: #{encoder_forward.2} parent=0 // pred_fallthru
    _
  %v26 = vld [vmem:[%s0] sm:$0xff]
  %v27 = vld [vmem:[%s0 + $0x8] sm:$0xff]
  %v28 = vld [vmem:[%s0 + $0x10] sm:$0xff]
  %v29 = vld [vmem:[%s0 + $0x18] sm:$0xff]
  %v30 = vld [vmem:[%s0 + $0x20] sm:$0xff]
  %v31 = vld [vmem:[%s0 + $0x28] sm:$0xff]
  %v32 = vld [vmem:[%s0 + $0x30] sm:$0xff]
  %v33 = vld [vmem:[%s0 + $0x38] sm:$0xff]
  %v34 = vld [vmem:[%s1] sm:$0xff]
  %v35 = vld [vmem:[%s1 + $0x8] sm:$0xff]
  %v36 = vld [vmem:[%s1 + $0x10] sm:$0xff]
  %v37 = vld [vmem:[%s1 + $0x18] sm:$0xff]
  %v38 = vld [vmem:[%s1 + $0x20] sm:$0xff]
  %v39 = vld [vmem:[%s1 + $0x28] sm:$0xff]
  %v40 = vld [vmem:[%s1 + $0x30] sm:$0xff]
  %v41 = vld [vmem:[%s1 + $0x38] sm:$0xff]
  %v42 = vld [vmem:[%s1 + $0x40] sm:$0xff]
  %v43 = vld [vmem:[%s1 + $0x48] sm:$0xff]
  %v44 = vld [vmem:[%s1 + $0x50] sm:$0xff]
  %v45 = vld [vmem:[%s1 + $0x58] sm:$0xff]
  %v46 = vld [vmem:[%s1 + $0x60] sm:$0xff]
  %v47 = vld [vmem:[%s1 + $0x68] sm:$0xff]
  %v48 = vld [vmem:[%s1 + $0x70] sm:$0xff]
  %v49 = vld [vmem:[%s1 + $0x78] sm:$0xff]
  %v50 = vld [vmem:[%s1 + $0x80] sm:$0xff]
  %v51 = vld [vmem:[%s1 + $0x88] sm:$0xff]
  %v52 = vld [vmem:[%s1 + $0x90] sm:$0xff]
  %v53 = vld [vmem:[%s1 + $0x98] sm:$0xff]
  %v54 = vld [vmem:[%s1 + $0xa0] sm:$0xff]
  %v55 = vld [vmem:[%s1 + $0xa8] sm:$0xff]
  %v56 = vld [vmem:[%s1 + $0xb0] sm:$0xff]
  %v57 = vld [vmem:[%s1 + $0xb8] sm:$0xff]
  %v58 = vld [vmem:[%s1 + $0xc0] sm:$0xff]
  %v59 = vld [vmem:[%s1 + $0xc8] sm:$0xff]
  %v60 = vld [vmem:[%s1 + $0xd0] sm:$0xff]
  %v61 = vld [vmem:[%s1 + $0xd8] sm:$0xff]
  %v62 = vld [vmem:[%s1 + $0xe0] sm:$0xff]
  %v63 = vld [vmem:[%s1 + $0xe8] sm:$0xff]
  %v64 = vld [vmem:[%s1 + $0xf0] sm:$0xff]
  %v65 = vld [vmem:[%s1 + $0xf8] sm:$0xff]
  %v66 = vld [vmem:[%s1 + $0x100] sm:$0xff]
  %v67 = vld [vmem:[%s1 + $0x108] sm:$0xff]
  %v68 = vld [vmem:[%s1 + $0x110] sm:$0xff]
  %v69 = vld [vmem:[%s1 + $0x118] sm:$0xff]
  %v70 = vld [vmem:[%s1 + $0x120] sm:$0xff]
  %v71 = vld [vmem:[%s1 + $0x128] sm:$0xff]
  %v72 = vld [vmem:[%s1 + $0x130] sm:$0xff]
  %v73 = vld [vmem:[%s1 + $0x138] sm:$0xff]
  %v74 = vld [vmem:[%s1 + $0x140] sm:$0xff]
  %v75 = vld [vmem:[%s1 + $0x148] sm:$0xff]
  %v76 = vld [vmem:[%s1 + $0x150] sm:$0xff]
  %v77 = vld [vmem:[%s1 + $0x158] sm:$0xff]
  %v78 = vld [vmem:[%s1 + $0x160] sm:$0xff]
  %v79 = vld [vmem:[%s1 + $0x168] sm:$0xff]
  %v80 = vld [vmem:[%s1 + $0x170] sm:$0xff]
  %v81 = vld [vmem:[%s1 + $0x178] sm:$0xff]
  %v82 = vld [vmem:[%s1 + $0x180] sm:$0xff]
  %v83 = vld [vmem:[%s1 + $0x188] sm:$0xff]
  %v84 = vld [vmem:[%s1 + $0x190] sm:$0xff]
  %v85 = vld [vmem:[%s1 + $0x198] sm:$0xff]
  %v86 = vld [vmem:[%s1 + $0x1a0] sm:$0xff]
  %v87 = vld [vmem:[%s1 + $0x1a8] sm:$0xff]
  %v88 = vld [vmem:[%s1 + $0x1b0] sm:$0xff]
  %v89 = vld [vmem:[%s1 + $0x1b8] sm:$0xff]
  %v90 = vld [vmem:[%s1 + $0x1c0] sm:$0xff]
  %v91 = vld [vmem:[%s1 + $0x1c8] sm:$0xff]
  %v92 = vld [vmem:[%s1 + $0x1d0] sm:$0xff]
  %v93 = vld [vmem:[%s1 + $0x1d8] sm:$0xff]
  %v94 = vld [vmem:[%s1 + $0x1e0] sm:$0xff]
  %v95 = vld [vmem:[%s1 + $0x1e8] sm:$0xff]
  %v96 = vld [vmem:[%s1 + $0x1f0] sm:$0xff]
  %v97 = vld [vmem:[%s1 + $0x1f8] sm:$0xff]
  %v98 = vld [vmem:[%s3] sm:$0xf]
  %v100 = vlaneseq
  %v101 = vshrl.u32 %v100, 7
  %v102 = vsub.s32 0, %v101
  %v103 = vrot.slane %v98, %v102
  %v104 = vlaneseq
  %v105 = vshrl.u32 %v104, 7
  %v106 = vsub.s32 1, %v105
  %v107 = vrot.slane %v98, %v106
  %v108 = vlaneseq
  %v109 = vshrl.u32 %v108, 7
  %v110 = vsub.s32 2, %v109
  %v111 = vrot.slane %v98, %v110
  %v112 = vlaneseq
  %v113 = vshrl.u32 %v112, 7
  %v114 = vsub.s32 3, %v113
  %v115 = vrot.slane %v98, %v114
  %120 = vmatprep.subr.mxu0 %v95
  %121 = vmatpush1.msra.mxu0 %v94
  %122 = vmatprep.subr.mxu0 %v91
  %123 = vmatpush1.msra.mxu0 %v90
  %124 = vmatprep.subr.mxu0 %v87
  %125 = vmatpush1.msra.mxu0 %v86
  %126 = vmatprep.subr.mxu0 %v83
  %127 = vmatpush1.msra.mxu0 %v82
  %128 = vmatprep.subr.mxu0 %v79
  %129 = vmatpush1.msra.mxu0 %v78
  %130 = vmatprep.subr.mxu0 %v75
  %131 = vmatpush1.msra.mxu0 %v74
  %132 = vmatprep.subr.mxu0 %v71
  %133 = vmatpush1.msra.mxu0 %v70
  %134 = vmatprep.subr.mxu0 %v67
  %135 = vmatpush1.msra.mxu0 %v66
  %136 = vmatprep.subr.mxu0 %v63
  %137 = vmatpush1.msra.mxu0 %v62
  %138 = vmatprep.subr.mxu0 %v59
  %139 = vmatpush1.msra.mxu0 %v58
  %140 = vmatprep.subr.mxu0 %v55
  %141 = vmatpush1.msra.mxu0 %v54
  %142 = vmatprep.subr.mxu0 %v51
  %143 = vmatpush1.msra.mxu0 %v50
  %144 = vmatprep.subr.mxu0 %v47
  %145 = vmatpush1.msra.mxu0 %v46
  %146 = vmatprep.subr.mxu0 %v43
  %147 = vmatpush1.msra.mxu0 %v42
  %148 = vmatprep.subr.mxu0 %v39
  %149 = vmatpush1.msra.mxu0 %v38
  %150 = vmatprep.subr.mxu0 %v35
  %151 = vmatpush1.msra.mxu0 %v34
  %152 = vmatprep.subr.mxu0 0.0
  %153 = vmatpush2.msra.mxu0 0.0
  %154 = vmatprep.subr.mxu0 0.0
  %155 = vmatpush2.msra.mxu0 0.0
  %156 = vmatprep.subr.mxu0 0.0
  %157 = vmatpush2.msra.mxu0 0.0
  %158 = vmatprep.subr.mxu0 0.0
  %159 = vmatpush2.msra.mxu0 0.0
  %160 = vmatprep.subr.mxu0 0.0
  %161 = vmatpush2.msra.mxu0 0.0
  %162 = vmatprep.subr.mxu0 0.0
  %163 = vmatpush2.msra.mxu0 0.0
  %164 = vmatprep.subr.mxu0 0.0
  %165 = vmatpush2.msra.mxu0 0.0
  %166 = vmatprep.subr.mxu0 0.0
  %167 = vmatpush2.msra.mxu0 0.0
  %168 = vmatprep.subr.mxu0 0.0
  %169 = vmatpush2.msra.mxu0 0.0
  %170 = vmatprep.subr.mxu0 0.0
  %171 = vmatpush2.msra.mxu0 0.0
  %172 = vmatprep.subr.mxu0 0.0
  %173 = vmatpush2.msra.mxu0 0.0
  %174 = vmatprep.subr.mxu0 0.0
  %175 = vmatpush2.msra.mxu0 0.0
  %176 = vmatprep.subr.mxu0 0.0
  %177 = vmatpush2.msra.mxu0 0.0
  %178 = vmatprep.subr.mxu0 0.0
  %179 = vmatpush2.msra.mxu0 0.0
  %180 = vmatprep.subr.mxu0 0.0
  %181 = vmatpush2.msra.mxu0 0.0
  %182 = vmatprep.subr.mxu0 0.0
  %183 = vmatpush2.msra.mxu0 0.0
  %184 = vmatprep.mubr.f32.mxu0 0.0
  %185 = vmatmul.mubr.f32.gmra.mxu0 %v26
  %v186 = vpop.f32.mrf.mxu0
  %v187 = vadd.f32 %v103, %v186
  %v188 = vpop.f32.mrf.mxu0
  %v189 = vadd.f32 %v107, %v188
  %190 = vmatprep.mubr.f32.mxu0 0.0
  %191 = vmatmul.mubr.f32.gmra.mxu0 %v27
  %v192 = vpop.f32.mrf.mxu0
  %v193 = vadd.f32 %v103, %v192
  %v194 = vpop.f32.mrf.mxu0
  %v195 = vadd.f32 %v107, %v194
  %196 = vmatprep.mubr.f32.mxu0 0.0
  %197 = vmatmul.mubr.f32.gmra.mxu0 %v28
  %v198 = vpop.f32.mrf.mxu0
  %v199 = vadd.f32 %v103, %v198
  %v200 = vpop.f32.mrf.mxu0
  %v201 = vadd.f32 %v107, %v200
  %202 = vmatprep.mubr.f32.mxu0 0.0
  %203 = vmatmul.mubr.f32.gmra.mxu0 %v29
  %v204 = vpop.f32.mrf.mxu0
  %v205 = vadd.f32 %v103, %v204
  %v206 = vpop.f32.mrf.mxu0
  %v207 = vadd.f32 %v107, %v206
  %208 = vmatprep.mubr.f32.mxu0 0.0
  %209 = vmatmul.mubr.f32.gmra.mxu0 %v30
  %v210 = vpop.f32.mrf.mxu0
  %v211 = vadd.f32 %v103, %v210
  %v212 = vpop.f32.mrf.mxu0
  %v213 = vadd.f32 %v107, %v212
  %214 = vmatprep.mubr.f32.mxu0 0.0
  %215 = vmatmul.mubr.f32.gmra.mxu0 %v31
  %v216 = vpop.f32.mrf.mxu0
  %v217 = vadd.f32 %v103, %v216
  %v218 = vpop.f32.mrf.mxu0
  %v219 = vadd.f32 %v107, %v218
  %220 = vmatprep.mubr.f32.mxu0 0.0
  %221 = vmatmul.mubr.f32.gmra.mxu0 %v32
  %v222 = vpop.f32.mrf.mxu0
  %v223 = vadd.f32 %v103, %v222
  %v224 = vpop.f32.mrf.mxu0
  %v225 = vadd.f32 %v107, %v224
  %226 = vmatprep.mubr.f32.mxu0 0.0
  %227 = vmatmul.mubr.f32.gmra.mxu0 %v33
  %v228 = vpop.f32.mrf.mxu0
  %v229 = vadd.f32 %v103, %v228
  %v230 = vpop.f32.mrf.mxu0
  %v231 = vadd.f32 %v107, %v230
  %232 = vdwg.mxu0
  %233 = vmatprep.subr.mxu0 %v97
  %234 = vmatpush1.msra.mxu0 %v96
  %235 = vmatprep.subr.mxu0 %v93
  %236 = vmatpush1.msra.mxu0 %v92
  %237 = vmatprep.subr.mxu0 %v89
  %238 = vmatpush1.msra.mxu0 %v88
  %239 = vmatprep.subr.mxu0 %v85
  %240 = vmatpush1.msra.mxu0 %v84
  %241 = vmatprep.subr.mxu0 %v81
  %242 = vmatpush1.msra.mxu0 %v80
  %243 = vmatprep.subr.mxu0 %v77
  %244 = vmatpush1.msra.mxu0 %v76
  %245 = vmatprep.subr.mxu0 %v73
  %246 = vmatpush1.msra.mxu0 %v72
  %247 = vmatprep.subr.mxu0 %v69
  %248 = vmatpush1.msra.mxu0 %v68
  %249 = vmatprep.subr.mxu0 %v65
  %250 = vmatpush1.msra.mxu0 %v64
  %251 = vmatprep.subr.mxu0 %v61
  %252 = vmatpush1.msra.mxu0 %v60
  %253 = vmatprep.subr.mxu0 %v57
  %254 = vmatpush1.msra.mxu0 %v56
  %255 = vmatprep.subr.mxu0 %v53
  %256 = vmatpush1.msra.mxu0 %v52
  %257 = vmatprep.subr.mxu0 %v49
  %258 = vmatpush1.msra.mxu0 %v48
  %259 = vmatprep.subr.mxu0 %v45
  %260 = vmatpush1.msra.mxu0 %v44
  %261 = vmatprep.subr.mxu0 %v41
  %262 = vmatpush1.msra.mxu0 %v40
  %263 = vmatprep.subr.mxu0 %v37
  %264 = vmatpush1.msra.mxu0 %v36
  %265 = vmatprep.subr.mxu0 0.0
  %266 = vmatpush2.msra.mxu0 0.0
  %267 = vmatprep.subr.mxu0 0.0
  %268 = vmatpush2.msra.mxu0 0.0
  %269 = vmatprep.subr.mxu0 0.0
  %270 = vmatpush2.msra.mxu0 0.0
  %271 = vmatprep.subr.mxu0 0.0
  %272 = vmatpush2.msra.mxu0 0.0
  %273 = vmatprep.subr.mxu0 0.0
  %274 = vmatpush2.msra.mxu0 0.0
  %275 = vmatprep.subr.mxu0 0.0
  %276 = vmatpush2.msra.mxu0 0.0
  %277 = vmatprep.subr.mxu0 0.0
  %278 = vmatpush2.msra.mxu0 0.0
  %279 = vmatprep.subr.mxu0 0.0
  %280 = vmatpush2.msra.mxu0 0.0
  %281 = vmatprep.subr.mxu0 0.0
  %282 = vmatpush2.msra.mxu0 0.0
  %283 = vmatprep.subr.mxu0 0.0
  %284 = vmatpush2.msra.mxu0 0.0
  %285 = vmatprep.subr.mxu0 0.0
  %286 = vmatpush2.msra.mxu0 0.0
  %287 = vmatprep.subr.mxu0 0.0
  %288 = vmatpush2.msra.mxu0 0.0
  %289 = vmatprep.subr.mxu0 0.0
  %290 = vmatpush2.msra.mxu0 0.0
  %291 = vmatprep.subr.mxu0 0.0
  %292 = vmatpush2.msra.mxu0 0.0
  %293 = vmatprep.subr.mxu0 0.0
  %294 = vmatpush2.msra.mxu0 0.0
  %295 = vmatprep.subr.mxu0 0.0
  %296 = vmatpush2.msra.mxu0 0.0
  %297 = vmatprep.mubr.f32.mxu0 0.0
  %298 = vmatmul.mubr.f32.gmra.mxu0 %v26
  %v299 = vpop.f32.mrf.mxu0
  %v300 = vadd.f32 %v111, %v299
  %v301 = vpop.f32.mrf.mxu0
  %v302 = vadd.f32 %v115, %v301
  %303 = vmatprep.mubr.f32.mxu0 0.0
  %304 = vmatmul.mubr.f32.gmra.mxu0 %v27
  %v305 = vpop.f32.mrf.mxu0
  %v306 = vadd.f32 %v111, %v305
  %v307 = vpop.f32.mrf.mxu0
  %v308 = vadd.f32 %v115, %v307
  %309 = vmatprep.mubr.f32.mxu0 0.0
  %310 = vmatmul.mubr.f32.gmra.mxu0 %v28
  %v311 = vpop.f32.mrf.mxu0
  %v312 = vadd.f32 %v111, %v311
  %v313 = vpop.f32.mrf.mxu0
  %v314 = vadd.f32 %v115, %v313
  %315 = vmatprep.mubr.f32.mxu0 0.0
  %316 = vmatmul.mubr.f32.gmra.mxu0 %v29
  %v317 = vpop.f32.mrf.mxu0
  %v318 = vadd.f32 %v111, %v317
  %v319 = vpop.f32.mrf.mxu0
  %v320 = vadd.f32 %v115, %v319
  %321 = vmatprep.mubr.f32.mxu0 0.0
  %322 = vmatmul.mubr.f32.gmra.mxu0 %v30
  %v323 = vpop.f32.mrf.mxu0
  %v324 = vadd.f32 %v111, %v323
  %v325 = vpop.f32.mrf.mxu0
  %v326 = vadd.f32 %v115, %v325
  %327 = vmatprep.mubr.f32.mxu0 0.0
  %328 = vmatmul.mubr.f32.gmra.mxu0 %v31
  %v329 = vpop.f32.mrf.mxu0
  %v330 = vadd.f32 %v111, %v329
  %v331 = vpop.f32.mrf.mxu0
  %v332 = vadd.f32 %v115, %v331
  %333 = vmatprep.mubr.f32.mxu0 0.0
  %334 = vmatmul.mubr.f32.gmra.mxu0 %v32
  %v335 = vpop.f32.mrf.mxu0
  %v336 = vadd.f32 %v111, %v335
  %v337 = vpop.f32.mrf.mxu0
  %v338 = vadd.f32 %v115, %v337
  %339 = vmatprep.mubr.f32.mxu0 0.0
  %340 = vmatmul.mubr.f32.gmra.mxu0 %v33
  %v341 = vpop.f32.mrf.mxu0
  %v342 = vadd.f32 %v111, %v341
  %v343 = vpop.f32.mrf.mxu0
  %v344 = vadd.f32 %v115, %v343
  %345 = vdwg.mxu0
  %346 = vst [vmem:[#allocation4] sm:$0xff] %v187
  %347 = vst [vmem:[#allocation4 + $0x8] sm:$0xff] %v189
  %348 = vst [vmem:[#allocation4 + $0x10] sm:$0xff] %v300
  %349 = vst [vmem:[#allocation4 + $0x18] sm:$0xff] %v302
  %350 = vst [vmem:[#allocation4 + $0x20] sm:$0xff] %v193
  %351 = vst [vmem:[#allocation4 + $0x28] sm:$0xff] %v195
  %352 = vst [vmem:[#allocation4 + $0x30] sm:$0xff] %v306
  %353 = vst [vmem:[#allocation4 + $0x38] sm:$0xff] %v308
  %354 = vst [vmem:[#allocation4 + $0x40] sm:$0xff] %v199
  %355 = vst [vmem:[#allocation4 + $0x48] sm:$0xff] %v201
  %356 = vst [vmem:[#allocation4 + $0x50] sm:$0xff] %v312
  %357 = vst [vmem:[#allocation4 + $0x58] sm:$0xff] %v314
  %358 = vst [vmem:[#allocation4 + $0x60] sm:$0xff] %v205
  %359 = vst [vmem:[#allocation4 + $0x68] sm:$0xff] %v207
  %360 = vst [vmem:[#allocation4 + $0x70] sm:$0xff] %v318
  %361 = vst [vmem:[#allocation4 + $0x78] sm:$0xff] %v320
  %362 = vst [vmem:[#allocation4 + $0x80] sm:$0xff] %v211
  %363 = vst [vmem:[#allocation4 + $0x88] sm:$0xff] %v213
  %364 = vst [vmem:[#allocation4 + $0x90] sm:$0xff] %v324
  %365 = vst [vmem:[#allocation4 + $0x98] sm:$0xff] %v326
  %366 = vst [vmem:[#allocation4 + $0xa0] sm:$0xff] %v217
  %367 = vst [vmem:[#allocation4 + $0xa8] sm:$0xff] %v219
  %368 = vst [vmem:[#allocation4 + $0xb0] sm:$0xff] %v330
  %369 = vst [vmem:[#allocation4 + $0xb8] sm:$0xff] %v332
  %370 = vst [vmem:[#allocation4 + $0xc0] sm:$0xff] %v223
  %371 = vst [vmem:[#allocation4 + $0xc8] sm:$0xff] %v225
  %372 = vst [vmem:[#allocation4 + $0xd0] sm:$0xff] %v336
  %373 = vst [vmem:[#allocation4 + $0xd8] sm:$0xff] %v338
  %374 = vst [vmem:[#allocation4 + $0xe0] sm:$0xff] %v229
  %375 = vst [vmem:[#allocation4 + $0xe8] sm:$0xff] %v231
  %376 = vst [vmem:[#allocation4 + $0xf0] sm:$0xff] %v342
  %377 = vst [vmem:[#allocation4 + $0xf8] sm:$0xff] %v344
  %v378 = vld [vmem:[%s2] sm:$0xff]
  %v379 = vld [vmem:[%s2 + $0x8] sm:$0xff]
  %v380 = vld [vmem:[%s2 + $0x10] sm:$0xff]
  %v381 = vld [vmem:[%s2 + $0x18] sm:$0xff]
  %v382 = vld [vmem:[%s2 + $0x20] sm:$0xff]
  %v383 = vld [vmem:[%s2 + $0x28] sm:$0xff]
  %v384 = vld [vmem:[%s2 + $0x30] sm:$0xff]
  %v385 = vld [vmem:[%s2 + $0x38] sm:$0xff]
  %v386 = vld [vmem:[%s2 + $0x40] sm:$0xff]
  %v387 = vld [vmem:[%s2 + $0x48] sm:$0xff]
  %v388 = vld [vmem:[%s2 + $0x50] sm:$0xff]
  %v389 = vld [vmem:[%s2 + $0x58] sm:$0xff]
  %v390 = vld [vmem:[%s2 + $0x60] sm:$0xff]
  %v391 = vld [vmem:[%s2 + $0x68] sm:$0xff]
  %v392 = vld [vmem:[%s2 + $0x70] sm:$0xff]
  %v393 = vld [vmem:[%s2 + $0x78] sm:$0xff]
  %v394 = vld [vmem:[%s2 + $0x80] sm:$0xff]
  %v395 = vld [vmem:[%s2 + $0x88] sm:$0xff]
  %v396 = vld [vmem:[%s2 + $0x90] sm:$0xff]
  %v397 = vld [vmem:[%s2 + $0x98] sm:$0xff]
  %v398 = vld [vmem:[%s2 + $0xa0] sm:$0xff]
  %v399 = vld [vmem:[%s2 + $0xa8] sm:$0xff]
  %v400 = vld [vmem:[%s2 + $0xb0] sm:$0xff]
  %v401 = vld [vmem:[%s2 + $0xb8] sm:$0xff]
  %v402 = vld [vmem:[%s2 + $0xc0] sm:$0xff]
  %v403 = vld [vmem:[%s2 + $0xc8] sm:$0xff]
  %v404 = vld [vmem:[%s2 + $0xd0] sm:$0xff]
  %v405 = vld [vmem:[%s2 + $0xd8] sm:$0xff]
  %v406 = vld [vmem:[%s2 + $0xe0] sm:$0xff]
  %v407 = vld [vmem:[%s2 + $0xe8] sm:$0xff]
  %v408 = vld [vmem:[%s2 + $0xf0] sm:$0xff]
  %v409 = vld [vmem:[%s2 + $0xf8] sm:$0xff]
  %v410 = vld [vmem:[%s2 + $0x100] sm:$0xff]
  %v411 = vld [vmem:[%s2 + $0x108] sm:$0xff]
  %v412 = vld [vmem:[%s2 + $0x110] sm:$0xff]
  %v413 = vld [vmem:[%s2 + $0x118] sm:$0xff]
  %v414 = vld [vmem:[%s2 + $0x120] sm:$0xff]
  %v415 = vld [vmem:[%s2 + $0x128] sm:$0xff]
  %v416 = vld [vmem:[%s2 + $0x130] sm:$0xff]
  %v417 = vld [vmem:[%s2 + $0x138] sm:$0xff]
  %v418 = vld [vmem:[%s2 + $0x140] sm:$0xff]
  %v419 = vld [vmem:[%s2 + $0x148] sm:$0xff]
  %v420 = vld [vmem:[%s2 + $0x150] sm:$0xff]
  %v421 = vld [vmem:[%s2 + $0x158] sm:$0xff]
  %v422 = vld [vmem:[%s2 + $0x160] sm:$0xff]
  %v423 = vld [vmem:[%s2 + $0x168] sm:$0xff]
  %v424 = vld [vmem:[%s2 + $0x170] sm:$0xff]
  %v425 = vld [vmem:[%s2 + $0x178] sm:$0xff]
  %v426 = vld [vmem:[%s2 + $0x180] sm:$0xff]
  %v427 = vld [vmem:[%s2 + $0x188] sm:$0xff]
  %v428 = vld [vmem:[%s2 + $0x190] sm:$0xff]
  %v429 = vld [vmem:[%s2 + $0x198] sm:$0xff]
  %v430 = vld [vmem:[%s2 + $0x1a0] sm:$0xff]
  %v431 = vld [vmem:[%s2 + $0x1a8] sm:$0xff]
  %v432 = vld [vmem:[%s2 + $0x1b0] sm:$0xff]
  %v433 = vld [vmem:[%s2 + $0x1b8] sm:$0xff]
  %v434 = vld [vmem:[%s2 + $0x1c0] sm:$0xff]
  %v435 = vld [vmem:[%s2 + $0x1c8] sm:$0xff]
  %v436 = vld [vmem:[%s2 + $0x1d0] sm:$0xff]
  %v437 = vld [vmem:[%s2 + $0x1d8] sm:$0xff]
  %v438 = vld [vmem:[%s2 + $0x1e0] sm:$0xff]
  %v439 = vld [vmem:[%s2 + $0x1e8] sm:$0xff]
  %v440 = vld [vmem:[%s2 + $0x1f0] sm:$0xff]
  %v441 = vld [vmem:[%s2 + $0x1f8] sm:$0xff]
  %v442 = vld [vmem:[#allocation2] sm:$0xff]
  %v443 = vld [vmem:[#allocation3] sm:$0xff]
  %s444 = smul.u32 0, 4
  %s445 = smul.addr %s444, 8
  %s446 = scalar_lea.vmem [#allocation4], %s445
  %v447 = vld [vmem:[%s446] sm:$0xff]
  %v448 = vld [vmem:[%s446 + $0x8] sm:$0xff]
  %v449 = vld [vmem:[%s446 + $0x10] sm:$0xff]
  %v450 = vld [vmem:[%s446 + $0x18] sm:$0xff]
  %451 = vmatprep.subr.mxu0 %v439
  %452 = vmatpush1.msra.mxu0 %v438
  %453 = vmatprep.subr.mxu0 %v435
  %454 = vmatpush1.msra.mxu0 %v434
  %455 = vmatprep.subr.mxu0 %v431
  %456 = vmatpush1.msra.mxu0 %v430
  %457 = vmatprep.subr.mxu0 %v427
  %458 = vmatpush1.msra.mxu0 %v426
  %459 = vmatprep.subr.mxu0 %v423
  %460 = vmatpush1.msra.mxu0 %v422
  %461 = vmatprep.subr.mxu0 %v419
  %462 = vmatpush1.msra.mxu0 %v418
  %463 = vmatprep.subr.mxu0 %v415
  %464 = vmatpush1.msra.mxu0 %v414
  %465 = vmatprep.subr.mxu0 %v411
  %466 = vmatpush1.msra.mxu0 %v410
  %467 = vmatprep.subr.mxu0 %v407
  %468 = vmatpush1.msra.mxu0 %v406
  %469 = vmatprep.subr.mxu0 %v403
  %470 = vmatpush1.msra.mxu0 %v402
  %471 = vmatprep.subr.mxu0 %v399
  %472 = vmatpush1.msra.mxu0 %v398
  %473 = vmatprep.subr.mxu0 %v395
  %474 = vmatpush1.msra.mxu0 %v394
  %475 = vmatprep.subr.mxu0 %v391
  %476 = vmatpush1.msra.mxu0 %v390
  %477 = vmatprep.subr.mxu0 %v387
  %478 = vmatpush1.msra.mxu0 %v386
  %479 = vmatprep.subr.mxu0 %v383
  %480 = vmatpush1.msra.mxu0 %v382
  %481 = vmatprep.subr.mxu0 %v379
  %482 = vmatpush1.msra.mxu0 %v378
  %483 = vmatprep.subr.mxu0 0.0
  %484 = vmatpush2.msra.mxu0 0.0
  %485 = vmatprep.subr.mxu0 0.0
  %486 = vmatpush2.msra.mxu0 0.0
  %487 = vmatprep.subr.mxu0 0.0
  %488 = vmatpush2.msra.mxu0 0.0
  %489 = vmatprep.subr.mxu0 0.0
  %490 = vmatpush2.msra.mxu0 0.0
  %491 = vmatprep.subr.mxu0 0.0
  %492 = vmatpush2.msra.mxu0 0.0
  %493 = vmatprep.subr.mxu0 0.0
  %494 = vmatpush2.msra.mxu0 0.0
  %495 = vmatprep.subr.mxu0 0.0
  %496 = vmatpush2.msra.mxu0 0.0
  %497 = vmatprep.subr.mxu0 0.0
  %498 = vmatpush2.msra.mxu0 0.0
  %499 = vmatprep.subr.mxu0 0.0
  %500 = vmatpush2.msra.mxu0 0.0
  %501 = vmatprep.subr.mxu0 0.0
  %502 = vmatpush2.msra.mxu0 0.0
  %503 = vmatprep.subr.mxu0 0.0
  %504 = vmatpush2.msra.mxu0 0.0
  %505 = vmatprep.subr.mxu0 0.0
  %506 = vmatpush2.msra.mxu0 0.0
  %507 = vmatprep.subr.mxu0 0.0
  %508 = vmatpush2.msra.mxu0 0.0
  %509 = vmatprep.subr.mxu0 0.0
  %510 = vmatpush2.msra.mxu0 0.0
  %511 = vmatprep.subr.mxu0 0.0
  %512 = vmatpush2.msra.mxu0 0.0
  %513 = vmatprep.subr.mxu0 0.0
  %514 = vmatpush2.msra.mxu0 0.0
  %515 = vmatprep.mubr.f32.mxu0 0.0
  %516 = vmatmul.mubr.f32.gmra.mxu0 %v442
  %v517 = vpop.f32.mrf.mxu0
  %v518 = vadd.f32 0.0, %v517
  %v519 = vpop.f32.mrf.mxu0
  %v520 = vadd.f32 0.0, %v519
  %521 = vdwg.mxu0
  %522 = vmatprep.subr.mxu0 %v441
  %523 = vmatpush1.msra.mxu0 %v440
  %524 = vmatprep.subr.mxu0 %v437
  %525 = vmatpush1.msra.mxu0 %v436
  %526 = vmatprep.subr.mxu0 %v433
  %527 = vmatpush1.msra.mxu0 %v432
  %528 = vmatprep.subr.mxu0 %v429
  %529 = vmatpush1.msra.mxu0 %v428
  %530 = vmatprep.subr.mxu0 %v425
  %531 = vmatpush1.msra.mxu0 %v424
  %532 = vmatprep.subr.mxu0 %v421
  %533 = vmatpush1.msra.mxu0 %v420
  %534 = vmatprep.subr.mxu0 %v417
  %535 = vmatpush1.msra.mxu0 %v416
  %536 = vmatprep.subr.mxu0 %v413
  %537 = vmatpush1.msra.mxu0 %v412
  %538 = vmatprep.subr.mxu0 %v409
  %539 = vmatpush1.msra.mxu0 %v408
  %540 = vmatprep.subr.mxu0 %v405
  %541 = vmatpush1.msra.mxu0 %v404
  %542 = vmatprep.subr.mxu0 %v401
  %543 = vmatpush1.msra.mxu0 %v400
  %544 = vmatprep.subr.mxu0 %v397
  %545 = vmatpush1.msra.mxu0 %v396
  %546 = vmatprep.subr.mxu0 %v393
  %547 = vmatpush1.msra.mxu0 %v392
  %548 = vmatprep.subr.mxu0 %v389
  %549 = vmatpush1.msra.mxu0 %v388
  %550 = vmatprep.subr.mxu0 %v385
  %551 = vmatpush1.msra.mxu0 %v384
  %552 = vmatprep.subr.mxu0 %v381
  %553 = vmatpush1.msra.mxu0 %v380
  %554 = vmatprep.subr.mxu0 0.0
  %555 = vmatpush2.msra.mxu0 0.0
  %556 = vmatprep.subr.mxu0 0.0
  %557 = vmatpush2.msra.mxu0 0.0
  %558 = vmatprep.subr.mxu0 0.0
  %559 = vmatpush2.msra.mxu0 0.0
  %560 = vmatprep.subr.mxu0 0.0
  %561 = vmatpush2.msra.mxu0 0.0
  %562 = vmatprep.subr.mxu0 0.0
  %563 = vmatpush2.msra.mxu0 0.0
  %564 = vmatprep.subr.mxu0 0.0
  %565 = vmatpush2.msra.mxu0 0.0
  %566 = vmatprep.subr.mxu0 0.0
  %567 = vmatpush2.msra.mxu0 0.0
  %568 = vmatprep.subr.mxu0 0.0
  %569 = vmatpush2.msra.mxu0 0.0
  %570 = vmatprep.subr.mxu0 0.0
  %571 = vmatpush2.msra.mxu0 0.0
  %572 = vmatprep.subr.mxu0 0.0
  %573 = vmatpush2.msra.mxu0 0.0
  %574 = vmatprep.subr.mxu0 0.0
  %575 = vmatpush2.msra.mxu0 0.0
  %576 = vmatprep.subr.mxu0 0.0
  %577 = vmatpush2.msra.mxu0 0.0
  %578 = vmatprep.subr.mxu0 0.0
  %579 = vmatpush2.msra.mxu0 0.0
  %580 = vmatprep.subr.mxu0 0.0
  %581 = vmatpush2.msra.mxu0 0.0
  %582 = vmatprep.subr.mxu0 0.0
  %583 = vmatpush2.msra.mxu0 0.0
  %584 = vmatprep.subr.mxu0 0.0
  %585 = vmatpush2.msra.mxu0 0.0
  %586 = vmatprep.mubr.f32.mxu0 0.0
  %587 = vmatmul.mubr.f32.gmra.mxu0 %v442
  %v588 = vpop.f32.mrf.mxu0
  %v589 = vadd.f32 0.0, %v588
  %v590 = vpop.f32.mrf.mxu0
  %v591 = vadd.f32 0.0, %v590
  %592 = vdwg.mxu0
  %v593 = vadd.f32 %v447, %v518
  %v594 = vadd.f32 %v448, %v520
  %v595 = vadd.f32 %v449, %v589
  %v596 = vadd.f32 %v450, %v591
  %v597 = vxor.u32 %v593, 2147483648
  %v598 = vmul.f32 %v597, 1.442695
  %v599 = vpow.pop %v598
  %v600 = vadd.f32 %v599, 1.0
  %v601 = vrcp.pop %v600
  %v602 = vmul.f32 1.0, %v601
  %v603 = vxor.u32 %v594, 2147483648
  %v604 = vmul.f32 %v603, 1.442695
  %v605 = vpow.pop %v604
  %v606 = vadd.f32 %v605, 1.0
  %v607 = vrcp.pop %v606
  %v608 = vmul.f32 1.0, %v607
  %v609 = vtanh.pop %v595
  %v610 = vxor.u32 %v596, 2147483648
  %v611 = vmul.f32 %v610, 1.442695
  %v612 = vpow.pop %v611
  %v613 = vadd.f32 %v612, 1.0
  %v614 = vrcp.pop %v613
  %v615 = vmul.f32 1.0, %v614
  %v616 = vmul.f32 %v608, %v443
  %v617 = vmul.f32 %v602, %v609
  %v618 = vadd.f32 %v616, %v617
  %v619 = vtanh.pop %v618
  %v620 = vmul.f32 %v615, %v619
  %621 = vst [vmem:[%s4] sm:$0xff] %v620
  %s622 = smul.u32 1, 4
  %s623 = smul.addr %s622, 8
  %s624 = scalar_lea.vmem [#allocation4], %s623
  %v625 = vld [vmem:[%s624] sm:$0xff]
  %v626 = vld [vmem:[%s624 + $0x8] sm:$0xff]
  %v627 = vld [vmem:[%s624 + $0x10] sm:$0xff]
  %v628 = vld [vmem:[%s624 + $0x18] sm:$0xff]
  %629 = vmatprep.subr.mxu0 %v439
  %630 = vmatpush1.msra.mxu0 %v438
  %631 = vmatprep.subr.mxu0 %v435
  %632 = vmatpush1.msra.mxu0 %v434
  %633 = vmatprep.subr.mxu0 %v431
  %634 = vmatpush1.msra.mxu0 %v430
  %635 = vmatprep.subr.mxu0 %v427
  %636 = vmatpush1.msra.mxu0 %v426
  %637 = vmatprep.subr.mxu0 %v423
  %638 = vmatpush1.msra.mxu0 %v422
  %639 = vmatprep.subr.mxu0 %v419
  %640 = vmatpush1.msra.mxu0 %v418
  %641 = vmatprep.subr.mxu0 %v415
  %642 = vmatpush1.msra.mxu0 %v414
  %643 = vmatprep.subr.mxu0 %v411
  %644 = vmatpush1.msra.mxu0 %v410
  %645 = vmatprep.subr.mxu0 %v407
  %646 = vmatpush1.msra.mxu0 %v406
  %647 = vmatprep.subr.mxu0 %v403
  %648 = vmatpush1.msra.mxu0 %v402
  %649 = vmatprep.subr.mxu0 %v399
  %650 = vmatpush1.msra.mxu0 %v398
  %651 = vmatprep.subr.mxu0 %v395
  %652 = vmatpush1.msra.mxu0 %v394
  %653 = vmatprep.subr.mxu0 %v391
  %654 = vmatpush1.msra.mxu0 %v390
  %655 = vmatprep.subr.mxu0 %v387
  %656 = vmatpush1.msra.mxu0 %v386
  %657 = vmatprep.subr.mxu0 %v383
  %658 = vmatpush1.msra.mxu0 %v382
  %659 = vmatprep.subr.mxu0 %v379
  %660 = vmatpush1.msra.mxu0 %v378
  %661 = vmatprep.subr.mxu0 0.0
  %662 = vmatpush2.msra.mxu0 0.0
  %663 = vmatprep.subr.mxu0 0.0
  %664 = vmatpush2.msra.mxu0 0.0
  %665 = vmatprep.subr.mxu0 0.0
  %666 = vmatpush2.msra.mxu0 0.0
  %667 = vmatprep.subr.mxu0 0.0
  %668 = vmatpush2.msra.mxu0 0.0
  %669 = vmatprep.subr.mxu0 0.0
  %670 = vmatpush2.msra.mxu0 0.0
  %671 = vmatprep.subr.mxu0 0.0
  %672 = vmatpush2.msra.mxu0 0.0
  %673 = vmatprep.subr.mxu0 0.0
  %674 = vmatpush2.msra.mxu0 0.0
  %675 = vmatprep.subr.mxu0 0.0
  %676 = vmatpush2.msra.mxu0 0.0
  %677 = vmatprep.subr.mxu0 0.0
  %678 = vmatpush2.msra.mxu0 0.0
  %679 = vmatprep.subr.mxu0 0.0
  %680 = vmatpush2.msra.mxu0 0.0
  %681 = vmatprep.subr.mxu0 0.0
  %682 = vmatpush2.msra.mxu0 0.0
  %683 = vmatprep.subr.mxu0 0.0
  %684 = vmatpush2.msra.mxu0 0.0
  %685 = vmatprep.subr.mxu0 0.0
  %686 = vmatpush2.msra.mxu0 0.0
  %687 = vmatprep.subr.mxu0 0.0
  %688 = vmatpush2.msra.mxu0 0.0
  %689 = vmatprep.subr.mxu0 0.0
  %690 = vmatpush2.msra.mxu0 0.0
  %691 = vmatprep.subr.mxu0 0.0
  %692 = vmatpush2.msra.mxu0 0.0
  %693 = vmatprep.mubr.f32.mxu0 0.0
  %694 = vmatmul.mubr.f32.gmra.mxu0 %v620
  %v695 = vpop.f32.mrf.mxu0
  %v696 = vadd.f32 0.0, %v695
  %v697 = vpop.f32.mrf.mxu0
  %v698 = vadd.f32 0.0, %v697
  %699 = vdwg.mxu0
  %700 = vmatprep.subr.mxu0 %v441
  %701 = vmatpush1.msra.mxu0 %v440
  %702 = vmatprep.subr.mxu0 %v437
  %703 = vmatpush1.msra.mxu0 %v436
  %704 = vmatprep.subr.mxu0 %v433
  %705 = vmatpush1.msra.mxu0 %v432
  %706 = vmatprep.subr.mxu0 %v429
  %707 = vmatpush1.msra.mxu0 %v428
  %708 = vmatprep.subr.mxu0 %v425
  %709 = vmatpush1.msra.mxu0 %v424
  %710 = vmatprep.subr.mxu0 %v421
  %711 = vmatpush1.msra.mxu0 %v420
  %712 = vmatprep.subr.mxu0 %v417
  %713 = vmatpush1.msra.mxu0 %v416
  %714 = vmatprep.subr.mxu0 %v413
  %715 = vmatpush1.msra.mxu0 %v412
  %716 = vmatprep.subr.mxu0 %v409
  %717 = vmatpush1.msra.mxu0 %v408
  %718 = vmatprep.subr.mxu0 %v405
  %719 = vmatpush1.msra.mxu0 %v404
  %720 = vmatprep.subr.mxu0 %v401
  %721 = vmatpush1.msra.mxu0 %v400
  %722 = vmatprep.subr.mxu0 %v397
  %723 = vmatpush1.msra.mxu0 %v396
  %724 = vmatprep.subr.mxu0 %v393
  %725 = vmatpush1.msra.mxu0 %v392
  %726 = vmatprep.subr.mxu0 %v389
  %727 = vmatpush1.msra.mxu0 %v388
  %728 = vmatprep.subr.mxu0 %v385
  %729 = vmatpush1.msra.mxu0 %v384
  %730 = vmatprep.subr.mxu0 %v381
  %731 = vmatpush1.msra.mxu0 %v380
  %732 = vmatprep.subr.mxu0 0.0
  %733 = vmatpush2.msra.mxu0 0.0
  %734 = vmatprep.subr.mxu0 0.0
  %735 = vmatpush2.msra.mxu0 0.0
  %736 = vmatprep.subr.mxu0 0.0
  %737 = vmatpush2.msra.mxu0 0.0
  %738 = vmatprep.subr.mxu0 0.0
  %739 = vmatpush2.msra.mxu0 0.0
  %740 = vmatprep.subr.mxu0 0.0
  %741 = vmatpush2.msra.mxu0 0.0
  %742 = vmatprep.subr.mxu0 0.0
  %743 = vmatpush2.msra.mxu0 0.0
  %744 = vmatprep.subr.mxu0 0.0
  %745 = vmatpush2.msra.mxu0 0.0
  %746 = vmatprep.subr.mxu0 0.0
  %747 = vmatpush2.msra.mxu0 0.0
  %748 = vmatprep.subr.mxu0 0.0
  %749 = vmatpush2.msra.mxu0 0.0
  %750 = vmatprep.subr.mxu0 0.0
  %751 = vmatpush2.msra.mxu0 0.0
  %752 = vmatprep.subr.mxu0 0.0
  %753 = vmatpush2.msra.mxu0 0.0
  %754 = vmatprep.subr.mxu0 0.0
  %755 = vmatpush2.msra.mxu0 0.0
  %756 = vmatprep.subr.mxu0 0.0
  %757 = vmatpush2.msra.mxu0 0.0
  %758 = vmatprep.subr.mxu0 0.0
  %759 = vmatpush2.msra.mxu0 0.0
  %760 = vmatprep.subr.mxu0 0.0
  %761 = vmatpush2.msra.mxu0 0.0
  %762 = vmatprep.subr.mxu0 0.0
  %763 = vmatpush2.msra.mxu0 0.0
  %764 = vmatprep.mubr.f32.mxu0 0.0
  %765 = vmatmul.mubr.f32.gmra.mxu0 %v620
  %v766 = vpop.f32.mrf.mxu0
  %v767 = vadd.f32 0.0, %v766
  %v768 = vpop.f32.mrf.mxu0
  %v769 = vadd.f32 0.0, %v768
  %770 = vdwg.mxu0
  %v771 = vadd.f32 %v625, %v696
  %v772 = vadd.f32 %v626, %v698
  %v773 = vadd.f32 %v627, %v767
  %v774 = vadd.f32 %v628, %v769
  %v775 = vxor.u32 %v771, 2147483648
  %v776 = vmul.f32 %v775, 1.442695
  %v777 = vpow.pop %v776
  %v778 = vadd.f32 %v777, 1.0
  %v779 = vrcp.pop %v778
  %v780 = vmul.f32 1.0, %v779
  %v781 = vxor.u32 %v772, 2147483648
  %v782 = vmul.f32 %v781, 1.442695
  %v783 = vpow.pop %v782
  %v784 = vadd.f32 %v783, 1.0
  %v785 = vrcp.pop %v784
  %v786 = vmul.f32 1.0, %v785
  %v787 = vtanh.pop %v773
  %v788 = vxor.u32 %v774, 2147483648
  %v789 = vmul.f32 %v788, 1.442695
  %v790 = vpow.pop %v789
  %v791 = vadd.f32 %v790, 1.0
  %v792 = vrcp.pop %v791
  %v793 = vmul.f32 1.0, %v792
  %v794 = vmul.f32 %v786, %v618
  %v795 = vmul.f32 %v780, %v787
  %v796 = vadd.f32 %v794, %v795
  %v797 = vtanh.pop %v796
  %v798 = vmul.f32 %v793, %v797
  %s799 = scalar_lea.vmem %s4, 8
  %800 = vst [vmem:[%s799] sm:$0xff] %v798
  %s801 = smul.u32 2, 4
  %s802 = smul.addr %s801, 8
  %s803 = scalar_lea.vmem [#allocation4], %s802
  %v804 = vld [vmem:[%s803] sm:$0xff]
  %v805 = vld [vmem:[%s803 + $0x8] sm:$0xff]
  %v806 = vld [vmem:[%s803 + $0x10] sm:$0xff]
  %v807 = vld [vmem:[%s803 + $0x18] sm:$0xff]
  %808 = vmatprep.subr.mxu0 %v439
  %809 = vmatpush1.msra.mxu0 %v438
  %810 = vmatprep.subr.mxu0 %v435
  %811 = vmatpush1.msra.mxu0 %v434
  %812 = vmatprep.subr.mxu0 %v431
  %813 = vmatpush1.msra.mxu0 %v430
  %814 = vmatprep.subr.mxu0 %v427
  %815 = vmatpush1.msra.mxu0 %v426
  %816 = vmatprep.subr.mxu0 %v423
  %817 = vmatpush1.msra.mxu0 %v422
  %818 = vmatprep.subr.mxu0 %v419
  %819 = vmatpush1.msra.mxu0 %v418
  %820 = vmatprep.subr.mxu0 %v415
  %821 = vmatpush1.msra.mxu0 %v414
  %822 = vmatprep.subr.mxu0 %v411
  %823 = vmatpush1.msra.mxu0 %v410
  %824 = vmatprep.subr.mxu0 %v407
  %825 = vmatpush1.msra.mxu0 %v406
  %826 = vmatprep.subr.mxu0 %v403
  %827 = vmatpush1.msra.mxu0 %v402
  %828 = vmatprep.subr.mxu0 %v399
  %829 = vmatpush1.msra.mxu0 %v398
  %830 = vmatprep.subr.mxu0 %v395
  %831 = vmatpush1.msra.mxu0 %v394
  %832 = vmatprep.subr.mxu0 %v391
  %833 = vmatpush1.msra.mxu0 %v390
  %834 = vmatprep.subr.mxu0 %v387
  %835 = vmatpush1.msra.mxu0 %v386
  %836 = vmatprep.subr.mxu0 %v383
  %837 = vmatpush1.msra.mxu0 %v382
  %838 = vmatprep.subr.mxu0 %v379
  %839 = vmatpush1.msra.mxu0 %v378
  %840 = vmatprep.subr.mxu0 0.0
  %841 = vmatpush2.msra.mxu0 0.0
  %842 = vmatprep.subr.mxu0 0.0
  %843 = vmatpush2.msra.mxu0 0.0
  %844 = vmatprep.subr.mxu0 0.0
  %845 = vmatpush2.msra.mxu0 0.0
  %846 = vmatprep.subr.mxu0 0.0
  %847 = vmatpush2.msra.mxu0 0.0
  %848 = vmatprep.subr.mxu0 0.0
  %849 = vmatpush2.msra.mxu0 0.0
  %850 = vmatprep.subr.mxu0 0.0
  %851 = vmatpush2.msra.mxu0 0.0
  %852 = vmatprep.subr.mxu0 0.0
  %853 = vmatpush2.msra.mxu0 0.0
  %854 = vmatprep.subr.mxu0 0.0
  %855 = vmatpush2.msra.mxu0 0.0
  %856 = vmatprep.subr.mxu0 0.0
  %857 = vmatpush2.msra.mxu0 0.0
  %858 = vmatprep.subr.mxu0 0.0
  %859 = vmatpush2.msra.mxu0 0.0
  %860 = vmatprep.subr.mxu0 0.0
  %861 = vmatpush2.msra.mxu0 0.0
  %862 = vmatprep.subr.mxu0 0.0
  %863 = vmatpush2.msra.mxu0 0.0
  %864 = vmatprep.subr.mxu0 0.0
  %865 = vmatpush2.msra.mxu0 0.0
  %866 = vmatprep.subr.mxu0 0.0
  %867 = vmatpush2.msra.mxu0 0.0
  %868 = vmatprep.subr.mxu0 0.0
  %869 = vmatpush2.msra.mxu0 0.0
  %870 = vmatprep.subr.mxu0 0.0
  %871 = vmatpush2.msra.mxu0 0.0
  %872 = vmatprep.mubr.f32.mxu0 0.0
  %873 = vmatmul.mubr.f32.gmra.mxu0 %v798
  %v874 = vpop.f32.mrf.mxu0
  %v875 = vadd.f32 0.0, %v874
  %v876 = vpop.f32.mrf.mxu0
  %v877 = vadd.f32 0.0, %v876
  %878 = vdwg.mxu0
  %879 = vmatprep.subr.mxu0 %v441
  %880 = vmatpush1.msra.mxu0 %v440
  %881 = vmatprep.subr.mxu0 %v437
  %882 = vmatpush1.msra.mxu0 %v436
  %883 = vmatprep.subr.mxu0 %v433
  %884 = vmatpush1.msra.mxu0 %v432
  %885 = vmatprep.subr.mxu0 %v429
  %886 = vmatpush1.msra.mxu0 %v428
  %887 = vmatprep.subr.mxu0 %v425
  %888 = vmatpush1.msra.mxu0 %v424
  %889 = vmatprep.subr.mxu0 %v421
  %890 = vmatpush1.msra.mxu0 %v420
  %891 = vmatprep.subr.mxu0 %v417
  %892 = vmatpush1.msra.mxu0 %v416
  %893 = vmatprep.subr.mxu0 %v413
  %894 = vmatpush1.msra.mxu0 %v412
  %895 = vmatprep.subr.mxu0 %v409
  %896 = vmatpush1.msra.mxu0 %v408
  %897 = vmatprep.subr.mxu0 %v405
  %898 = vmatpush1.msra.mxu0 %v404
  %899 = vmatprep.subr.mxu0 %v401
  %900 = vmatpush1.msra.mxu0 %v400
  %901 = vmatprep.subr.mxu0 %v397
  %902 = vmatpush1.msra.mxu0 %v396
  %903 = vmatprep.subr.mxu0 %v393
  %904 = vmatpush1.msra.mxu0 %v392
  %905 = vmatprep.subr.mxu0 %v389
  %906 = vmatpush1.msra.mxu0 %v388
  %907 = vmatprep.subr.mxu0 %v385
  %908 = vmatpush1.msra.mxu0 %v384
  %909 = vmatprep.subr.mxu0 %v381
  %910 = vmatpush1.msra.mxu0 %v380
  %911 = vmatprep.subr.mxu0 0.0
  %912 = vmatpush2.msra.mxu0 0.0
  %913 = vmatprep.subr.mxu0 0.0
  %914 = vmatpush2.msra.mxu0 0.0
  %915 = vmatprep.subr.mxu0 0.0
  %916 = vmatpush2.msra.mxu0 0.0
  %917 = vmatprep.subr.mxu0 0.0
  %918 = vmatpush2.msra.mxu0 0.0
  %919 = vmatprep.subr.mxu0 0.0
  %920 = vmatpush2.msra.mxu0 0.0
  %921 = vmatprep.subr.mxu0 0.0
  %922 = vmatpush2.msra.mxu0 0.0
  %923 = vmatprep.subr.mxu0 0.0
  %924 = vmatpush2.msra.mxu0 0.0
  %925 = vmatprep.subr.mxu0 0.0
  %926 = vmatpush2.msra.mxu0 0.0
  %927 = vmatprep.subr.mxu0 0.0
  %928 = vmatpush2.msra.mxu0 0.0
  %929 = vmatprep.subr.mxu0 0.0
  %930 = vmatpush2.msra.mxu0 0.0
  %931 = vmatprep.subr.mxu0 0.0
  %932 = vmatpush2.msra.mxu0 0.0
  %933 = vmatprep.subr.mxu0 0.0
  %934 = vmatpush2.msra.mxu0 0.0
  %935 = vmatprep.subr.mxu0 0.0
  %936 = vmatpush2.msra.mxu0 0.0
  %937 = vmatprep.subr.mxu0 0.0
  %938 = vmatpush2.msra.mxu0 0.0
  %939 = vmatprep.subr.mxu0 0.0
  %940 = vmatpush2.msra.mxu0 0.0
  %941 = vmatprep.subr.mxu0 0.0
  %942 = vmatpush2.msra.mxu0 0.0
  %943 = vmatprep.mubr.f32.mxu0 0.0
  %944 = vmatmul.mubr.f32.gmra.mxu0 %v798
  %v945 = vpop.f32.mrf.mxu0
  %v946 = vadd.f32 0.0, %v945
  %v947 = vpop.f32.mrf.mxu0
  %v948 = vadd.f32 0.0, %v947
  %949 = vdwg.mxu0
  %v950 = vadd.f32 %v804, %v875
  %v951 = vadd.f32 %v805, %v877
  %v952 = vadd.f32 %v806, %v946
  %v953 = vadd.f32 %v807, %v948
  %v954 = vxor.u32 %v950, 2147483648
  %v955 = vmul.f32 %v954, 1.442695
  %v956 = vpow.pop %v955
  %v957 = vadd.f32 %v956, 1.0
  %v958 = vrcp.pop %v957
  %v959 = vmul.f32 1.0, %v958
  %v960 = vxor.u32 %v951, 2147483648
  %v961 = vmul.f32 %v960, 1.442695
  %v962 = vpow.pop %v961
  %v963 = vadd.f32 %v962, 1.0
  %v964 = vrcp.pop %v963
  %v965 = vmul.f32 1.0, %v964
  %v966 = vtanh.pop %v952
  %v967 = vxor.u32 %v953, 2147483648
  %v968 = vmul.f32 %v967, 1.442695
  %v969 = vpow.pop %v968
  %v970 = vadd.f32 %v969, 1.0
  %v971 = vrcp.pop %v970
  %v972 = vmul.f32 1.0, %v971
  %v973 = vmul.f32 %v965, %v796
  %v974 = vmul.f32 %v959, %v966
  %v975 = vadd.f32 %v973, %v974
  %v976 = vtanh.pop %v975
  %v977 = vmul.f32 %v972, %v976
  %s978 = scalar_lea.vmem %s4, 16
  %979 = vst [vmem:[%s978] sm:$0xff] %v977
  %s980 = smul.u32 3, 4
  %s981 = smul.addr %s980, 8
  %s982 = scalar_lea.vmem [#allocation4], %s981
  %v983 = vld [vmem:[%s982] sm:$0xff]
  %v984 = vld [vmem:[%s982 + $0x8] sm:$0xff]
  %v985 = vld [vmem:[%s982 + $0x10] sm:$0xff]
  %v986 = vld [vmem:[%s982 + $0x18] sm:$0xff]
  %987 = vmatprep.subr.mxu0 %v439
  %988 = vmatpush1.msra.mxu0 %v438
  %989 = vmatprep.subr.mxu0 %v435
  %990 = vmatpush1.msra.mxu0 %v434
  %991 = vmatprep.subr.mxu0 %v431
  %992 = vmatpush1.msra.mxu0 %v430
  %993 = vmatprep.subr.mxu0 %v427
  %994 = vmatpush1.msra.mxu0 %v426
  %995 = vmatprep.subr.mxu0 %v423
  %996 = vmatpush1.msra.mxu0 %v422
  %997 = vmatprep.subr.mxu0 %v419
  %998 = vmatpush1.msra.mxu0 %v418
  %999 = vmatprep.subr.mxu0 %v415
  %1000 = vmatpush1.msra.mxu0 %v414
  %1001 = vmatprep.subr.mxu0 %v411
  %1002 = vmatpush1.msra.mxu0 %v410
  %1003 = vmatprep.subr.mxu0 %v407
  %1004 = vmatpush1.msra.mxu0 %v406
  %1005 = vmatprep.subr.mxu0 %v403
  %1006 = vmatpush1.msra.mxu0 %v402
  %1007 = vmatprep.subr.mxu0 %v399
  %1008 = vmatpush1.msra.mxu0 %v398
  %1009 = vmatprep.subr.mxu0 %v395
  %1010 = vmatpush1.msra.mxu0 %v394
  %1011 = vmatprep.subr.mxu0 %v391
  %1012 = vmatpush1.msra.mxu0 %v390
  %1013 = vmatprep.subr.mxu0 %v387
  %1014 = vmatpush1.msra.mxu0 %v386
  %1015 = vmatprep.subr.mxu0 %v383
  %1016 = vmatpush1.msra.mxu0 %v382
  %1017 = vmatprep.subr.mxu0 %v379
  %1018 = vmatpush1.msra.mxu0 %v378
  %1019 = vmatprep.subr.mxu0 0.0
  %1020 = vmatpush2.msra.mxu0 0.0
  %1021 = vmatprep.subr.mxu0 0.0
  %1022 = vmatpush2.msra.mxu0 0.0
  %1023 = vmatprep.subr.mxu0 0.0
  %1024 = vmatpush2.msra.mxu0 0.0
  %1025 = vmatprep.subr.mxu0 0.0
  %1026 = vmatpush2.msra.mxu0 0.0
  %1027 = vmatprep.subr.mxu0 0.0
  %1028 = vmatpush2.msra.mxu0 0.0
  %1029 = vmatprep.subr.mxu0 0.0
  %1030 = vmatpush2.msra.mxu0 0.0
  %1031 = vmatprep.subr.mxu0 0.0
  %1032 = vmatpush2.msra.mxu0 0.0
  %1033 = vmatprep.subr.mxu0 0.0
  %1034 = vmatpush2.msra.mxu0 0.0
  %1035 = vmatprep.subr.mxu0 0.0
  %1036 = vmatpush2.msra.mxu0 0.0
  %1037 = vmatprep.subr.mxu0 0.0
  %1038 = vmatpush2.msra.mxu0 0.0
  %1039 = vmatprep.subr.mxu0 0.0
  %1040 = vmatpush2.msra.mxu0 0.0
  %1041 = vmatprep.subr.mxu0 0.0
  %1042 = vmatpush2.msra.mxu0 0.0
  %1043 = vmatprep.subr.mxu0 0.0
  %1044 = vmatpush2.msra.mxu0 0.0
  %1045 = vmatprep.subr.mxu0 0.0
  %1046 = vmatpush2.msra.mxu0 0.0
  %1047 = vmatprep.subr.mxu0 0.0
  %1048 = vmatpush2.msra.mxu0 0.0
  %1049 = vmatprep.subr.mxu0 0.0
  %1050 = vmatpush2.msra.mxu0 0.0
  %1051 = vmatprep.mubr.f32.mxu0 0.0
  %1052 = vmatmul.mubr.f32.gmra.mxu0 %v977
  %v1053 = vpop.f32.mrf.mxu0
  %v1054 = vadd.f32 0.0, %v1053
  %v1055 = vpop.f32.mrf.mxu0
  %v1056 = vadd.f32 0.0, %v1055
  %1057 = vdwg.mxu0
  %1058 = vmatprep.subr.mxu0 %v441
  %1059 = vmatpush1.msra.mxu0 %v440
  %1060 = vmatprep.subr.mxu0 %v437
  %1061 = vmatpush1.msra.mxu0 %v436
  %1062 = vmatprep.subr.mxu0 %v433
  %1063 = vmatpush1.msra.mxu0 %v432
  %1064 = vmatprep.subr.mxu0 %v429
  %1065 = vmatpush1.msra.mxu0 %v428
  %1066 = vmatprep.subr.mxu0 %v425
  %1067 = vmatpush1.msra.mxu0 %v424
  %1068 = vmatprep.subr.mxu0 %v421
  %1069 = vmatpush1.msra.mxu0 %v420
  %1070 = vmatprep.subr.mxu0 %v417
  %1071 = vmatpush1.msra.mxu0 %v416
  %1072 = vmatprep.subr.mxu0 %v413
  %1073 = vmatpush1.msra.mxu0 %v412
  %1074 = vmatprep.subr.mxu0 %v409
  %1075 = vmatpush1.msra.mxu0 %v408
  %1076 = vmatprep.subr.mxu0 %v405
  %1077 = vmatpush1.msra.mxu0 %v404
  %1078 = vmatprep.subr.mxu0 %v401
  %1079 = vmatpush1.msra.mxu0 %v400
  %1080 = vmatprep.subr.mxu0 %v397
  %1081 = vmatpush1.msra.mxu0 %v396
  %1082 = vmatprep.subr.mxu0 %v393
  %1083 = vmatpush1.msra.mxu0 %v392
  %1084 = vmatprep.subr.mxu0 %v389
  %1085 = vmatpush1.msra.mxu0 %v388
  %1086 = vmatprep.subr.mxu0 %v385
  %1087 = vmatpush1.msra.mxu0 %v384
  %1088 = vmatprep.subr.mxu0 %v381
  %1089 = vmatpush1.msra.mxu0 %v380
  %1090 = vmatprep.subr.mxu0 0.0
  %1091 = vmatpush2.msra.mxu0 0.0
  %1092 = vmatprep.subr.mxu0 0.0
  %1093 = vmatpush2.msra.mxu0 0.0
  %1094 = vmatprep.subr.mxu0 0.0
  %1095 = vmatpush2.msra.mxu0 0.0
  %1096 = vmatprep.subr.mxu0 0.0
  %1097 = vmatpush2.msra.mxu0 0.0
  %1098 = vmatprep.subr.mxu0 0.0
  %1099 = vmatpush2.msra.mxu0 0.0
  %1100 = vmatprep.subr.mxu0 0.0
  %1101 = vmatpush2.msra.mxu0 0.0
  %1102 = vmatprep.subr.mxu0 0.0
  %1103 = vmatpush2.msra.mxu0 0.0
  %1104 = vmatprep.subr.mxu0 0.0
  %1105 = vmatpush2.msra.mxu0 0.0
  %1106 = vmatprep.subr.mxu0 0.0
  %1107 = vmatpush2.msra.mxu0 0.0
  %1108 = vmatprep.subr.mxu0 0.0
  %1109 = vmatpush2.msra.mxu0 0.0
  %1110 = vmatprep.subr.mxu0 0.0
  %1111 = vmatpush2.msra.mxu0 0.0
  %1112 = vmatprep.subr.mxu0 0.0
  %1113 = vmatpush2.msra.mxu0 0.0
  %1114 = vmatprep.subr.mxu0 0.0
  %1115 = vmatpush2.msra.mxu0 0.0
  %1116 = vmatprep.subr.mxu0 0.0
  %1117 = vmatpush2.msra.mxu0 0.0
  %1118 = vmatprep.subr.mxu0 0.0
  %1119 = vmatpush2.msra.mxu0 0.0
  %1120 = vmatprep.subr.mxu0 0.0
  %1121 = vmatpush2.msra.mxu0 0.0
  %1122 = vmatprep.mubr.f32.mxu0 0.0
  %1123 = vmatmul.mubr.f32.gmra.mxu0 %v977
  %v1124 = vpop.f32.mrf.mxu0
  %v1125 = vadd.f32 0.0, %v1124
  %v1126 = vpop.f32.mrf.mxu0
  %v1127 = vadd.f32 0.0, %v1126
  %1128 = vdwg.mxu0
  %v1129 = vadd.f32 %v983, %v1054
  %v1130 = vadd.f32 %v984, %v1056
  %v1131 = vadd.f32 %v985, %v1125
  %v1132 = vadd.f32 %v986, %v1127
  %v1133 = vxor.u32 %v1129, 2147483648
  %v1134 = vmul.f32 %v1133, 1.442695
  %v1135 = vpow.pop %v1134
  %v1136 = vadd.f32 %v1135, 1.0
  %v1137 = vrcp.pop %v1136
  %v1138 = vmul.f32 1.0, %v1137
  %v1139 = vxor.u32 %v1130, 2147483648
  %v1140 = vmul.f32 %v1139, 1.442695
  %v1141 = vpow.pop %v1140
  %v1142 = vadd.f32 %v1141, 1.0
  %v1143 = vrcp.pop %v1142
  %v1144 = vmul.f32 1.0, %v1143
  %v1145 = vtanh.pop %v1131
  %v1146 = vxor.u32 %v1132, 2147483648
  %v1147 = vmul.f32 %v1146, 1.442695
  %v1148 = vpow.pop %v1147
  %v1149 = vadd.f32 %v1148, 1.0
  %v1150 = vrcp.pop %v1149
  %v1151 = vmul.f32 1.0, %v1150
  %v1152 = vmul.f32 %v1144, %v975
  %v1153 = vmul.f32 %v1138, %v1145
  %v1154 = vadd.f32 %v1152, %v1153
  %v1155 = vtanh.pop %v1154
  %v1156 = vmul.f32 %v1151, %v1155
  %s1157 = scalar_lea.vmem %s4, 24
  %1158 = vst [vmem:[%s1157] sm:$0xff] %v1156
  %s1159 = smul.u32 4, 4
  %s1160 = smul.addr %s1159, 8
  %s1161 = scalar_lea.vmem [#allocation4], %s1160
  %v1162 = vld [vmem:[%s1161] sm:$0xff]
  %v1163 = vld [vmem:[%s1161 + $0x8] sm:$0xff]
  %v1164 = vld [vmem:[%s1161 + $0x10] sm:$0xff]
  %v1165 = vld [vmem:[%s1161 + $0x18] sm:$0xff]
  %1166 = vmatprep.subr.mxu0 %v439
  %1167 = vmatpush1.msra.mxu0 %v438
  %1168 = vmatprep.subr.mxu0 %v435
  %1169 = vmatpush1.msra.mxu0 %v434
  %1170 = vmatprep.subr.mxu0 %v431
  %1171 = vmatpush1.msra.mxu0 %v430
  %1172 = vmatprep.subr.mxu0 %v427
  %1173 = vmatpush1.msra.mxu0 %v426
  %1174 = vmatprep.subr.mxu0 %v423
  %1175 = vmatpush1.msra.mxu0 %v422
  %1176 = vmatprep.subr.mxu0 %v419
  %1177 = vmatpush1.msra.mxu0 %v418
  %1178 = vmatprep.subr.mxu0 %v415
  %1179 = vmatpush1.msra.mxu0 %v414
  %1180 = vmatprep.subr.mxu0 %v411
  %1181 = vmatpush1.msra.mxu0 %v410
  %1182 = vmatprep.subr.mxu0 %v407
  %1183 = vmatpush1.msra.mxu0 %v406
  %1184 = vmatprep.subr.mxu0 %v403
  %1185 = vmatpush1.msra.mxu0 %v402
  %1186 = vmatprep.subr.mxu0 %v399
  %1187 = vmatpush1.msra.mxu0 %v398
  %1188 = vmatprep.subr.mxu0 %v395
  %1189 = vmatpush1.msra.mxu0 %v394
  %1190 = vmatprep.subr.mxu0 %v391
  %1191 = vmatpush1.msra.mxu0 %v390
  %1192 = vmatprep.subr.mxu0 %v387
  %1193 = vmatpush1.msra.mxu0 %v386
  %1194 = vmatprep.subr.mxu0 %v383
  %1195 = vmatpush1.msra.mxu0 %v382
  %1196 = vmatprep.subr.mxu0 %v379
  %1197 = vmatpush1.msra.mxu0 %v378
  %1198 = vmatprep.subr.mxu0 0.0
  %1199 = vmatpush2.msra.mxu0 0.0
  %1200 = vmatprep.subr.mxu0 0.0
  %1201 = vmatpush2.msra.mxu0 0.0
  %1202 = vmatprep.subr.mxu0 0.0
  %1203 = vmatpush2.msra.mxu0 0.0
  %1204 = vmatprep.subr.mxu0 0.0
  %1205 = vmatpush2.msra.mxu0 0.0
  %1206 = vmatprep.subr.mxu0 0.0
  %1207 = vmatpush2.msra.mxu0 0.0
  %1208 = vmatprep.subr.mxu0 0.0
  %1209 = vmatpush2.msra.mxu0 0.0
  %1210 = vmatprep.subr.mxu0 0.0
  %1211 = vmatpush2.msra.mxu0 0.0
  %1212 = vmatprep.subr.mxu0 0.0
  %1213 = vmatpush2.msra.mxu0 0.0
  %1214 = vmatprep.subr.mxu0 0.0
  %1215 = vmatpush2.msra.mxu0 0.0
  %1216 = vmatprep.subr.mxu0 0.0
  %1217 = vmatpush2.msra.mxu0 0.0
  %1218 = vmatprep.subr.mxu0 0.0
  %1219 = vmatpush2.msra.mxu0 0.0
  %1220 = vmatprep.subr.mxu0 0.0
  %1221 = vmatpush2.msra.mxu0 0.0
  %1222 = vmatprep.subr.mxu0 0.0
  %1223 = vmatpush2.msra.mxu0 0.0
  %1224 = vmatprep.subr.mxu0 0.0
  %1225 = vmatpush2.msra.mxu0 0.0
  %1226 = vmatprep.subr.mxu0 0.0
  %1227 = vmatpush2.msra.mxu0 0.0
  %1228 = vmatprep.subr.mxu0 0.0
  %1229 = vmatpush2.msra.mxu0 0.0
  %1230 = vmatprep.mubr.f32.mxu0 0.0
  %1231 = vmatmul.mubr.f32.gmra.mxu0 %v1156
  %v1232 = vpop.f32.mrf.mxu0
  %v1233 = vadd.f32 0.0, %v1232
  %v1234 = vpop.f32.mrf.mxu0
  %v1235 = vadd.f32 0.0, %v1234
  %1236 = vdwg.mxu0
  %1237 = vmatprep.subr.mxu0 %v441
  %1238 = vmatpush1.msra.mxu0 %v440
  %1239 = vmatprep.subr.mxu0 %v437
  %1240 = vmatpush1.msra.mxu0 %v436
  %1241 = vmatprep.subr.mxu0 %v433
  %1242 = vmatpush1.msra.mxu0 %v432
  %1243 = vmatprep.subr.mxu0 %v429
  %1244 = vmatpush1.msra.mxu0 %v428
  %1245 = vmatprep.subr.mxu0 %v425
  %1246 = vmatpush1.msra.mxu0 %v424
  %1247 = vmatprep.subr.mxu0 %v421
  %1248 = vmatpush1.msra.mxu0 %v420
  %1249 = vmatprep.subr.mxu0 %v417
  %1250 = vmatpush1.msra.mxu0 %v416
  %1251 = vmatprep.subr.mxu0 %v413
  %1252 = vmatpush1.msra.mxu0 %v412
  %1253 = vmatprep.subr.mxu0 %v409
  %1254 = vmatpush1.msra.mxu0 %v408
  %1255 = vmatprep.subr.mxu0 %v405
  %1256 = vmatpush1.msra.mxu0 %v404
  %1257 = vmatprep.subr.mxu0 %v401
  %1258 = vmatpush1.msra.mxu0 %v400
  %1259 = vmatprep.subr.mxu0 %v397
  %1260 = vmatpush1.msra.mxu0 %v396
  %1261 = vmatprep.subr.mxu0 %v393
  %1262 = vmatpush1.msra.mxu0 %v392
  %1263 = vmatprep.subr.mxu0 %v389
  %1264 = vmatpush1.msra.mxu0 %v388
  %1265 = vmatprep.subr.mxu0 %v385
  %1266 = vmatpush1.msra.mxu0 %v384
  %1267 = vmatprep.subr.mxu0 %v381
  %1268 = vmatpush1.msra.mxu0 %v380
  %1269 = vmatprep.subr.mxu0 0.0
  %1270 = vmatpush2.msra.mxu0 0.0
  %1271 = vmatprep.subr.mxu0 0.0
  %1272 = vmatpush2.msra.mxu0 0.0
  %1273 = vmatprep.subr.mxu0 0.0
  %1274 = vmatpush2.msra.mxu0 0.0
  %1275 = vmatprep.subr.mxu0 0.0
  %1276 = vmatpush2.msra.mxu0 0.0
  %1277 = vmatprep.subr.mxu0 0.0
  %1278 = vmatpush2.msra.mxu0 0.0
  %1279 = vmatprep.subr.mxu0 0.0
  %1280 = vmatpush2.msra.mxu0 0.0
  %1281 = vmatprep.subr.mxu0 0.0
  %1282 = vmatpush2.msra.mxu0 0.0
  %1283 = vmatprep.subr.mxu0 0.0
  %1284 = vmatpush2.msra.mxu0 0.0
  %1285 = vmatprep.subr.mxu0 0.0
  %1286 = vmatpush2.msra.mxu0 0.0
  %1287 = vmatprep.subr.mxu0 0.0
  %1288 = vmatpush2.msra.mxu0 0.0
  %1289 = vmatprep.subr.mxu0 0.0
  %1290 = vmatpush2.msra.mxu0 0.0
  %1291 = vmatprep.subr.mxu0 0.0
  %1292 = vmatpush2.msra.mxu0 0.0
  %1293 = vmatprep.subr.mxu0 0.0
  %1294 = vmatpush2.msra.mxu0 0.0
  %1295 = vmatprep.subr.mxu0 0.0
  %1296 = vmatpush2.msra.mxu0 0.0
  %1297 = vmatprep.subr.mxu0 0.0
  %1298 = vmatpush2.msra.mxu0 0.0
  %1299 = vmatprep.subr.mxu0 0.0
  %1300 = vmatpush2.msra.mxu0 0.0
  %1301 = vmatprep.mubr.f32.mxu0 0.0
  %1302 = vmatmul.mubr.f32.gmra.mxu0 %v1156
  %v1303 = vpop.f32.mrf.mxu0
  %v1304 = vadd.f32 0.0, %v1303
  %v1305 = vpop.f32.mrf.mxu0
  %v1306 = vadd.f32 0.0, %v1305
  %1307 = vdwg.mxu0
  %v1308 = vadd.f32 %v1162, %v1233
  %v1309 = vadd.f32 %v1163, %v1235
  %v1310 = vadd.f32 %v1164, %v1304
  %v1311 = vadd.f32 %v1165, %v1306
  %v1312 = vxor.u32 %v1308, 2147483648
  %v1313 = vmul.f32 %v1312, 1.442695
  %v1314 = vpow.pop %v1313
  %v1315 = vadd.f32 %v1314, 1.0
  %v1316 = vrcp.pop %v1315
  %v1317 = vmul.f32 1.0, %v1316
  %v1318 = vxor.u32 %v1309, 2147483648
  %v1319 = vmul.f32 %v1318, 1.442695
  %v1320 = vpow.pop %v1319
  %v1321 = vadd.f32 %v1320, 1.0
  %v1322 = vrcp.pop %v1321
  %v1323 = vmul.f32 1.0, %v1322
  %v1324 = vtanh.pop %v1310
  %v1325 = vxor.u32 %v1311, 2147483648
  %v1326 = vmul.f32 %v1325, 1.442695
  %v1327 = vpow.pop %v1326
  %v1328 = vadd.f32 %v1327, 1.0
  %v1329 = vrcp.pop %v1328
  %v1330 = vmul.f32 1.0, %v1329
  %v1331 = vmul.f32 %v1323, %v1154
  %v1332 = vmul.f32 %v1317, %v1324
  %v1333 = vadd.f32 %v1331, %v1332
  %v1334 = vtanh.pop %v1333
  %v1335 = vmul.f32 %v1330, %v1334
  %s1336 = scalar_lea.vmem %s4, 32
  %1337 = vst [vmem:[%s1336] sm:$0xff] %v1335
  %s1338 = smul.u32 5, 4
  %s1339 = smul.addr %s1338, 8
  %s1340 = scalar_lea.vmem [#allocation4], %s1339
  %v1341 = vld [vmem:[%s1340] sm:$0xff]
  %v1342 = vld [vmem:[%s1340 + $0x8] sm:$0xff]
  %v1343 = vld [vmem:[%s1340 + $0x10] sm:$0xff]
  %v1344 = vld [vmem:[%s1340 + $0x18] sm:$0xff]
  %1345 = vmatprep.subr.mxu0 %v439
  %1346 = vmatpush1.msra.mxu0 %v438
  %1347 = vmatprep.subr.mxu0 %v435
  %1348 = vmatpush1.msra.mxu0 %v434
  %1349 = vmatprep.subr.mxu0 %v431
  %1350 = vmatpush1.msra.mxu0 %v430
  %1351 = vmatprep.subr.mxu0 %v427
  %1352 = vmatpush1.msra.mxu0 %v426
  %1353 = vmatprep.subr.mxu0 %v423
  %1354 = vmatpush1.msra.mxu0 %v422
  %1355 = vmatprep.subr.mxu0 %v419
  %1356 = vmatpush1.msra.mxu0 %v418
  %1357 = vmatprep.subr.mxu0 %v415
  %1358 = vmatpush1.msra.mxu0 %v414
  %1359 = vmatprep.subr.mxu0 %v411
  %1360 = vmatpush1.msra.mxu0 %v410
  %1361 = vmatprep.subr.mxu0 %v407
  %1362 = vmatpush1.msra.mxu0 %v406
  %1363 = vmatprep.subr.mxu0 %v403
  %1364 = vmatpush1.msra.mxu0 %v402
  %1365 = vmatprep.subr.mxu0 %v399
  %1366 = vmatpush1.msra.mxu0 %v398
  %1367 = vmatprep.subr.mxu0 %v395
  %1368 = vmatpush1.msra.mxu0 %v394
  %1369 = vmatprep.subr.mxu0 %v391
  %1370 = vmatpush1.msra.mxu0 %v390
  %1371 = vmatprep.subr.mxu0 %v387
  %1372 = vmatpush1.msra.mxu0 %v386
  %1373 = vmatprep.subr.mxu0 %v383
  %1374 = vmatpush1.msra.mxu0 %v382
  %1375 = vmatprep.subr.mxu0 %v379
  %1376 = vmatpush1.msra.mxu0 %v378
  %1377 = vmatprep.subr.mxu0 0.0
  %1378 = vmatpush2.msra.mxu0 0.0
  %1379 = vmatprep.subr.mxu0 0.0
  %1380 = vmatpush2.msra.mxu0 0.0
  %1381 = vmatprep.subr.mxu0 0.0
  %1382 = vmatpush2.msra.mxu0 0.0
  %1383 = vmatprep.subr.mxu0 0.0
  %1384 = vmatpush2.msra.mxu0 0.0
  %1385 = vmatprep.subr.mxu0 0.0
  %1386 = vmatpush2.msra.mxu0 0.0
  %1387 = vmatprep.subr.mxu0 0.0
  %1388 = vmatpush2.msra.mxu0 0.0
  %1389 = vmatprep.subr.mxu0 0.0
  %1390 = vmatpush2.msra.mxu0 0.0
  %1391 = vmatprep.subr.mxu0 0.0
  %1392 = vmatpush2.msra.mxu0 0.0
  %1393 = vmatprep.subr.mxu0 0.0
  %1394 = vmatpush2.msra.mxu0 0.0
  %1395 = vmatprep.subr.mxu0 0.0
  %1396 = vmatpush2.msra.mxu0 0.0
  %1397 = vmatprep.subr.mxu0 0.0
  %1398 = vmatpush2.msra.mxu0 0.0
  %1399 = vmatprep.subr.mxu0 0.0
  %1400 = vmatpush2.msra.mxu0 0.0
  %1401 = vmatprep.subr.mxu0 0.0
  %1402 = vmatpush2.msra.mxu0 0.0
  %1403 = vmatprep.subr.mxu0 0.0
  %1404 = vmatpush2.msra.mxu0 0.0
  %1405 = vmatprep.subr.mxu0 0.0
  %1406 = vmatpush2.msra.mxu0 0.0
  %1407 = vmatprep.subr.mxu0 0.0
  %1408 = vmatpush2.msra.mxu0 0.0
  %1409 = vmatprep.mubr.f32.mxu0 0.0
  %1410 = vmatmul.mubr.f32.gmra.mxu0 %v1335
  %v1411 = vpop.f32.mrf.mxu0
  %v1412 = vadd.f32 0.0, %v1411
  %v1413 = vpop.f32.mrf.mxu0
  %v1414 = vadd.f32 0.0, %v1413
  %1415 = vdwg.mxu0
  %1416 = vmatprep.subr.mxu0 %v441
  %1417 = vmatpush1.msra.mxu0 %v440
  %1418 = vmatprep.subr.mxu0 %v437
  %1419 = vmatpush1.msra.mxu0 %v436
  %1420 = vmatprep.subr.mxu0 %v433
  %1421 = vmatpush1.msra.mxu0 %v432
  %1422 = vmatprep.subr.mxu0 %v429
  %1423 = vmatpush1.msra.mxu0 %v428
  %1424 = vmatprep.subr.mxu0 %v425
  %1425 = vmatpush1.msra.mxu0 %v424
  %1426 = vmatprep.subr.mxu0 %v421
  %1427 = vmatpush1.msra.mxu0 %v420
  %1428 = vmatprep.subr.mxu0 %v417
  %1429 = vmatpush1.msra.mxu0 %v416
  %1430 = vmatprep.subr.mxu0 %v413
  %1431 = vmatpush1.msra.mxu0 %v412
  %1432 = vmatprep.subr.mxu0 %v409
  %1433 = vmatpush1.msra.mxu0 %v408
  %1434 = vmatprep.subr.mxu0 %v405
  %1435 = vmatpush1.msra.mxu0 %v404
  %1436 = vmatprep.subr.mxu0 %v401
  %1437 = vmatpush1.msra.mxu0 %v400
  %1438 = vmatprep.subr.mxu0 %v397
  %1439 = vmatpush1.msra.mxu0 %v396
  %1440 = vmatprep.subr.mxu0 %v393
  %1441 = vmatpush1.msra.mxu0 %v392
  %1442 = vmatprep.subr.mxu0 %v389
  %1443 = vmatpush1.msra.mxu0 %v388
  %1444 = vmatprep.subr.mxu0 %v385
  %1445 = vmatpush1.msra.mxu0 %v384
  %1446 = vmatprep.subr.mxu0 %v381
  %1447 = vmatpush1.msra.mxu0 %v380
  %1448 = vmatprep.subr.mxu0 0.0
  %1449 = vmatpush2.msra.mxu0 0.0
  %1450 = vmatprep.subr.mxu0 0.0
  %1451 = vmatpush2.msra.mxu0 0.0
  %1452 = vmatprep.subr.mxu0 0.0
  %1453 = vmatpush2.msra.mxu0 0.0
  %1454 = vmatprep.subr.mxu0 0.0
  %1455 = vmatpush2.msra.mxu0 0.0
  %1456 = vmatprep.subr.mxu0 0.0
  %1457 = vmatpush2.msra.mxu0 0.0
  %1458 = vmatprep.subr.mxu0 0.0
  %1459 = vmatpush2.msra.mxu0 0.0
  %1460 = vmatprep.subr.mxu0 0.0
  %1461 = vmatpush2.msra.mxu0 0.0
  %1462 = vmatprep.subr.mxu0 0.0
  %1463 = vmatpush2.msra.mxu0 0.0
  %1464 = vmatprep.subr.mxu0 0.0
  %1465 = vmatpush2.msra.mxu0 0.0
  %1466 = vmatprep.subr.mxu0 0.0
  %1467 = vmatpush2.msra.mxu0 0.0
  %1468 = vmatprep.subr.mxu0 0.0
  %1469 = vmatpush2.msra.mxu0 0.0
  %1470 = vmatprep.subr.mxu0 0.0
  %1471 = vmatpush2.msra.mxu0 0.0
  %1472 = vmatprep.subr.mxu0 0.0
  %1473 = vmatpush2.msra.mxu0 0.0
  %1474 = vmatprep.subr.mxu0 0.0
  %1475 = vmatpush2.msra.mxu0 0.0
  %1476 = vmatprep.subr.mxu0 0.0
  %1477 = vmatpush2.msra.mxu0 0.0
  %1478 = vmatprep.subr.mxu0 0.0
  %1479 = vmatpush2.msra.mxu0 0.0
  %1480 = vmatprep.mubr.f32.mxu0 0.0
  %1481 = vmatmul.mubr.f32.gmra.mxu0 %v1335
  %v1482 = vpop.f32.mrf.mxu0
  %v1483 = vadd.f32 0.0, %v1482
  %v1484 = vpop.f32.mrf.mxu0
  %v1485 = vadd.f32 0.0, %v1484
  %1486 = vdwg.mxu0
  %v1487 = vadd.f32 %v1341, %v1412
  %v1488 = vadd.f32 %v1342, %v1414
  %v1489 = vadd.f32 %v1343, %v1483
  %v1490 = vadd.f32 %v1344, %v1485
  %v1491 = vxor.u32 %v1487, 2147483648
  %v1492 = vmul.f32 %v1491, 1.442695
  %v1493 = vpow.pop %v1492
  %v1494 = vadd.f32 %v1493, 1.0
  %v1495 = vrcp.pop %v1494
  %v1496 = vmul.f32 1.0, %v1495
  %v1497 = vxor.u32 %v1488, 2147483648
  %v1498 = vmul.f32 %v1497, 1.442695
  %v1499 = vpow.pop %v1498
  %v1500 = vadd.f32 %v1499, 1.0
  %v1501 = vrcp.pop %v1500
  %v1502 = vmul.f32 1.0, %v1501
  %v1503 = vtanh.pop %v1489
  %v1504 = vxor.u32 %v1490, 2147483648
  %v1505 = vmul.f32 %v1504, 1.442695
  %v1506 = vpow.pop %v1505
  %v1507 = vadd.f32 %v1506, 1.0
  %v1508 = vrcp.pop %v1507
  %v1509 = vmul.f32 1.0, %v1508
  %v1510 = vmul.f32 %v1502, %v1333
  %v1511 = vmul.f32 %v1496, %v1503
  %v1512 = vadd.f32 %v1510, %v1511
  %v1513 = vtanh.pop %v1512
  %v1514 = vmul.f32 %v1509, %v1513
  %s1515 = scalar_lea.vmem %s4, 40
  %1516 = vst [vmem:[%s1515] sm:$0xff] %v1514
  %s1517 = smul.u32 6, 4
  %s1518 = smul.addr %s1517, 8
  %s1519 = scalar_lea.vmem [#allocation4], %s1518
  %v1520 = vld [vmem:[%s1519] sm:$0xff]
  %v1521 = vld [vmem:[%s1519 + $0x8] sm:$0xff]
  %v1522 = vld [vmem:[%s1519 + $0x10] sm:$0xff]
  %v1523 = vld [vmem:[%s1519 + $0x18] sm:$0xff]
  %1524 = vmatprep.subr.mxu0 %v439
  %1525 = vmatpush1.msra.mxu0 %v438
  %1526 = vmatprep.subr.mxu0 %v435
  %1527 = vmatpush1.msra.mxu0 %v434
  %1528 = vmatprep.subr.mxu0 %v431
  %1529 = vmatpush1.msra.mxu0 %v430
  %1530 = vmatprep.subr.mxu0 %v427
  %1531 = vmatpush1.msra.mxu0 %v426
  %1532 = vmatprep.subr.mxu0 %v423
  %1533 = vmatpush1.msra.mxu0 %v422
  %1534 = vmatprep.subr.mxu0 %v419
  %1535 = vmatpush1.msra.mxu0 %v418
  %1536 = vmatprep.subr.mxu0 %v415
  %1537 = vmatpush1.msra.mxu0 %v414
  %1538 = vmatprep.subr.mxu0 %v411
  %1539 = vmatpush1.msra.mxu0 %v410
  %1540 = vmatprep.subr.mxu0 %v407
  %1541 = vmatpush1.msra.mxu0 %v406
  %1542 = vmatprep.subr.mxu0 %v403
  %1543 = vmatpush1.msra.mxu0 %v402
  %1544 = vmatprep.subr.mxu0 %v399
  %1545 = vmatpush1.msra.mxu0 %v398
  %1546 = vmatprep.subr.mxu0 %v395
  %1547 = vmatpush1.msra.mxu0 %v394
  %1548 = vmatprep.subr.mxu0 %v391
  %1549 = vmatpush1.msra.mxu0 %v390
  %1550 = vmatprep.subr.mxu0 %v387
  %1551 = vmatpush1.msra.mxu0 %v386
  %1552 = vmatprep.subr.mxu0 %v383
  %1553 = vmatpush1.msra.mxu0 %v382
  %1554 = vmatprep.subr.mxu0 %v379
  %1555 = vmatpush1.msra.mxu0 %v378
  %1556 = vmatprep.subr.mxu0 0.0
  %1557 = vmatpush2.msra.mxu0 0.0
  %1558 = vmatprep.subr.mxu0 0.0
  %1559 = vmatpush2.msra.mxu0 0.0
  %1560 = vmatprep.subr.mxu0 0.0
  %1561 = vmatpush2.msra.mxu0 0.0
  %1562 = vmatprep.subr.mxu0 0.0
  %1563 = vmatpush2.msra.mxu0 0.0
  %1564 = vmatprep.subr.mxu0 0.0
  %1565 = vmatpush2.msra.mxu0 0.0
  %1566 = vmatprep.subr.mxu0 0.0
  %1567 = vmatpush2.msra.mxu0 0.0
  %1568 = vmatprep.subr.mxu0 0.0
  %1569 = vmatpush2.msra.mxu0 0.0
  %1570 = vmatprep.subr.mxu0 0.0
  %1571 = vmatpush2.msra.mxu0 0.0
  %1572 = vmatprep.subr.mxu0 0.0
  %1573 = vmatpush2.msra.mxu0 0.0
  %1574 = vmatprep.subr.mxu0 0.0
  %1575 = vmatpush2.msra.mxu0 0.0
  %1576 = vmatprep.subr.mxu0 0.0
  %1577 = vmatpush2.msra.mxu0 0.0
  %1578 = vmatprep.subr.mxu0 0.0
  %1579 = vmatpush2.msra.mxu0 0.0
  %1580 = vmatprep.subr.mxu0 0.0
  %1581 = vmatpush2.msra.mxu0 0.0
  %1582 = vmatprep.subr.mxu0 0.0
  %1583 = vmatpush2.msra.mxu0 0.0
  %1584 = vmatprep.subr.mxu0 0.0
  %1585 = vmatpush2.msra.mxu0 0.0
  %1586 = vmatprep.subr.mxu0 0.0
  %1587 = vmatpush2.msra.mxu0 0.0
  %1588 = vmatprep.mubr.f32.mxu0 0.0
  %1589 = vmatmul.mubr.f32.gmra.mxu0 %v1514
  %v1590 = vpop.f32.mrf.mxu0
  %v1591 = vadd.f32 0.0, %v1590
  %v1592 = vpop.f32.mrf.mxu0
  %v1593 = vadd.f32 0.0, %v1592
  %1594 = vdwg.mxu0
  %1595 = vmatprep.subr.mxu0 %v441
  %1596 = vmatpush1.msra.mxu0 %v440
  %1597 = vmatprep.subr.mxu0 %v437
  %1598 = vmatpush1.msra.mxu0 %v436
  %1599 = vmatprep.subr.mxu0 %v433
  %1600 = vmatpush1.msra.mxu0 %v432
  %1601 = vmatprep.subr.mxu0 %v429
  %1602 = vmatpush1.msra.mxu0 %v428
  %1603 = vmatprep.subr.mxu0 %v425
  %1604 = vmatpush1.msra.mxu0 %v424
  %1605 = vmatprep.subr.mxu0 %v421
  %1606 = vmatpush1.msra.mxu0 %v420
  %1607 = vmatprep.subr.mxu0 %v417
  %1608 = vmatpush1.msra.mxu0 %v416
  %1609 = vmatprep.subr.mxu0 %v413
  %1610 = vmatpush1.msra.mxu0 %v412
  %1611 = vmatprep.subr.mxu0 %v409
  %1612 = vmatpush1.msra.mxu0 %v408
  %1613 = vmatprep.subr.mxu0 %v405
  %1614 = vmatpush1.msra.mxu0 %v404
  %1615 = vmatprep.subr.mxu0 %v401
  %1616 = vmatpush1.msra.mxu0 %v400
  %1617 = vmatprep.subr.mxu0 %v397
  %1618 = vmatpush1.msra.mxu0 %v396
  %1619 = vmatprep.subr.mxu0 %v393
  %1620 = vmatpush1.msra.mxu0 %v392
  %1621 = vmatprep.subr.mxu0 %v389
  %1622 = vmatpush1.msra.mxu0 %v388
  %1623 = vmatprep.subr.mxu0 %v385
  %1624 = vmatpush1.msra.mxu0 %v384
  %1625 = vmatprep.subr.mxu0 %v381
  %1626 = vmatpush1.msra.mxu0 %v380
  %1627 = vmatprep.subr.mxu0 0.0
  %1628 = vmatpush2.msra.mxu0 0.0
  %1629 = vmatprep.subr.mxu0 0.0
  %1630 = vmatpush2.msra.mxu0 0.0
  %1631 = vmatprep.subr.mxu0 0.0
  %1632 = vmatpush2.msra.mxu0 0.0
  %1633 = vmatprep.subr.mxu0 0.0
  %1634 = vmatpush2.msra.mxu0 0.0
  %1635 = vmatprep.subr.mxu0 0.0
  %1636 = vmatpush2.msra.mxu0 0.0
  %1637 = vmatprep.subr.mxu0 0.0
  %1638 = vmatpush2.msra.mxu0 0.0
  %1639 = vmatprep.subr.mxu0 0.0
  %1640 = vmatpush2.msra.mxu0 0.0
  %1641 = vmatprep.subr.mxu0 0.0
  %1642 = vmatpush2.msra.mxu0 0.0
  %1643 = vmatprep.subr.mxu0 0.0
  %1644 = vmatpush2.msra.mxu0 0.0
  %1645 = vmatprep.subr.mxu0 0.0
  %1646 = vmatpush2.msra.mxu0 0.0
  %1647 = vmatprep.subr.mxu0 0.0
  %1648 = vmatpush2.msra.mxu0 0.0
  %1649 = vmatprep.subr.mxu0 0.0
  %1650 = vmatpush2.msra.mxu0 0.0
  %1651 = vmatprep.subr.mxu0 0.0
  %1652 = vmatpush2.msra.mxu0 0.0
  %1653 = vmatprep.subr.mxu0 0.0
  %1654 = vmatpush2.msra.mxu0 0.0
  %1655 = vmatprep.subr.mxu0 0.0
  %1656 = vmatpush2.msra.mxu0 0.0
  %1657 = vmatprep.subr.mxu0 0.0
  %1658 = vmatpush2.msra.mxu0 0.0
  %1659 = vmatprep.mubr.f32.mxu0 0.0
  %1660 = vmatmul.mubr.f32.gmra.mxu0 %v1514
  %v1661 = vpop.f32.mrf.mxu0
  %v1662 = vadd.f32 0.0, %v1661
  %v1663 = vpop.f32.mrf.mxu0
  %v1664 = vadd.f32 0.0, %v1663
  %1665 = vdwg.mxu0
  %v1666 = vadd.f32 %v1520, %v1591
  %v1667 = vadd.f32 %v1521, %v1593
  %v1668 = vadd.f32 %v1522, %v1662
  %v1669 = vadd.f32 %v1523, %v1664
  %v1670 = vxor.u32 %v1666, 2147483648
  %v1671 = vmul.f32 %v1670, 1.442695
  %v1672 = vpow.pop %v1671
  %v1673 = vadd.f32 %v1672, 1.0
  %v1674 = vrcp.pop %v1673
  %v1675 = vmul.f32 1.0, %v1674
  %v1676 = vxor.u32 %v1667, 2147483648
  %v1677 = vmul.f32 %v1676, 1.442695
  %v1678 = vpow.pop %v1677
  %v1679 = vadd.f32 %v1678, 1.0
  %v1680 = vrcp.pop %v1679
  %v1681 = vmul.f32 1.0, %v1680
  %v1682 = vtanh.pop %v1668
  %v1683 = vxor.u32 %v1669, 2147483648
  %v1684 = vmul.f32 %v1683, 1.442695
  %v1685 = vpow.pop %v1684
  %v1686 = vadd.f32 %v1685, 1.0
  %v1687 = vrcp.pop %v1686
  %v1688 = vmul.f32 1.0, %v1687
  %v1689 = vmul.f32 %v1681, %v1512
  %v1690 = vmul.f32 %v1675, %v1682
  %v1691 = vadd.f32 %v1689, %v1690
  %v1692 = vtanh.pop %v1691
  %v1693 = vmul.f32 %v1688, %v1692
  %s1694 = scalar_lea.vmem %s4, 48
  %1695 = vst [vmem:[%s1694] sm:$0xff] %v1693
  %s1696 = smul.u32 7, 4
  %s1697 = smul.addr %s1696, 8
  %s1698 = scalar_lea.vmem [#allocation4], %s1697
  %v1699 = vld [vmem:[%s1698] sm:$0xff]
  %v1700 = vld [vmem:[%s1698 + $0x8] sm:$0xff]
  %v1701 = vld [vmem:[%s1698 + $0x10] sm:$0xff]
  %v1702 = vld [vmem:[%s1698 + $0x18] sm:$0xff]
  %1703 = vmatprep.subr.mxu0 %v439
  %1704 = vmatpush1.msra.mxu0 %v438
  %1705 = vmatprep.subr.mxu0 %v435
  %1706 = vmatpush1.msra.mxu0 %v434
  %1707 = vmatprep.subr.mxu0 %v431
  %1708 = vmatpush1.msra.mxu0 %v430
  %1709 = vmatprep.subr.mxu0 %v427
  %1710 = vmatpush1.msra.mxu0 %v426
  %1711 = vmatprep.subr.mxu0 %v423
  %1712 = vmatpush1.msra.mxu0 %v422
  %1713 = vmatprep.subr.mxu0 %v419
  %1714 = vmatpush1.msra.mxu0 %v418
  %1715 = vmatprep.subr.mxu0 %v415
  %1716 = vmatpush1.msra.mxu0 %v414
  %1717 = vmatprep.subr.mxu0 %v411
  %1718 = vmatpush1.msra.mxu0 %v410
  %1719 = vmatprep.subr.mxu0 %v407
  %1720 = vmatpush1.msra.mxu0 %v406
  %1721 = vmatprep.subr.mxu0 %v403
  %1722 = vmatpush1.msra.mxu0 %v402
  %1723 = vmatprep.subr.mxu0 %v399
  %1724 = vmatpush1.msra.mxu0 %v398
  %1725 = vmatprep.subr.mxu0 %v395
  %1726 = vmatpush1.msra.mxu0 %v394
  %1727 = vmatprep.subr.mxu0 %v391
  %1728 = vmatpush1.msra.mxu0 %v390
  %1729 = vmatprep.subr.mxu0 %v387
  %1730 = vmatpush1.msra.mxu0 %v386
  %1731 = vmatprep.subr.mxu0 %v383
  %1732 = vmatpush1.msra.mxu0 %v382
  %1733 = vmatprep.subr.mxu0 %v379
  %1734 = vmatpush1.msra.mxu0 %v378
  %1735 = vmatprep.subr.mxu0 0.0
  %1736 = vmatpush2.msra.mxu0 0.0
  %1737 = vmatprep.subr.mxu0 0.0
  %1738 = vmatpush2.msra.mxu0 0.0
  %1739 = vmatprep.subr.mxu0 0.0
  %1740 = vmatpush2.msra.mxu0 0.0
  %1741 = vmatprep.subr.mxu0 0.0
  %1742 = vmatpush2.msra.mxu0 0.0
  %1743 = vmatprep.subr.mxu0 0.0
  %1744 = vmatpush2.msra.mxu0 0.0
  %1745 = vmatprep.subr.mxu0 0.0
  %1746 = vmatpush2.msra.mxu0 0.0
  %1747 = vmatprep.subr.mxu0 0.0
  %1748 = vmatpush2.msra.mxu0 0.0
  %1749 = vmatprep.subr.mxu0 0.0
  %1750 = vmatpush2.msra.mxu0 0.0
  %1751 = vmatprep.subr.mxu0 0.0
  %1752 = vmatpush2.msra.mxu0 0.0
  %1753 = vmatprep.subr.mxu0 0.0
  %1754 = vmatpush2.msra.mxu0 0.0
  %1755 = vmatprep.subr.mxu0 0.0
  %1756 = vmatpush2.msra.mxu0 0.0
  %1757 = vmatprep.subr.mxu0 0.0
  %1758 = vmatpush2.msra.mxu0 0.0
  %1759 = vmatprep.subr.mxu0 0.0
  %1760 = vmatpush2.msra.mxu0 0.0
  %1761 = vmatprep.subr.mxu0 0.0
  %1762 = vmatpush2.msra.mxu0 0.0
  %1763 = vmatprep.subr.mxu0 0.0
  %1764 = vmatpush2.msra.mxu0 0.0
  %1765 = vmatprep.subr.mxu0 0.0
  %1766 = vmatpush2.msra.mxu0 0.0
  %1767 = vmatprep.mubr.f32.mxu0 0.0
  %1768 = vmatmul.mubr.f32.gmra.mxu0 %v1693
  %v1769 = vpop.f32.mrf.mxu0
  %v1770 = vadd.f32 0.0, %v1769
  %v1771 = vpop.f32.mrf.mxu0
  %v1772 = vadd.f32 0.0, %v1771
  %1773 = vdwg.mxu0
  %1774 = vmatprep.subr.mxu0 %v441
  %1775 = vmatpush1.msra.mxu0 %v440
  %1776 = vmatprep.subr.mxu0 %v437
  %1777 = vmatpush1.msra.mxu0 %v436
  %1778 = vmatprep.subr.mxu0 %v433
  %1779 = vmatpush1.msra.mxu0 %v432
  %1780 = vmatprep.subr.mxu0 %v429
  %1781 = vmatpush1.msra.mxu0 %v428
  %1782 = vmatprep.subr.mxu0 %v425
  %1783 = vmatpush1.msra.mxu0 %v424
  %1784 = vmatprep.subr.mxu0 %v421
  %1785 = vmatpush1.msra.mxu0 %v420
  %1786 = vmatprep.subr.mxu0 %v417
  %1787 = vmatpush1.msra.mxu0 %v416
  %1788 = vmatprep.subr.mxu0 %v413
  %1789 = vmatpush1.msra.mxu0 %v412
  %1790 = vmatprep.subr.mxu0 %v409
  %1791 = vmatpush1.msra.mxu0 %v408
  %1792 = vmatprep.subr.mxu0 %v405
  %1793 = vmatpush1.msra.mxu0 %v404
  %1794 = vmatprep.subr.mxu0 %v401
  %1795 = vmatpush1.msra.mxu0 %v400
  %1796 = vmatprep.subr.mxu0 %v397
  %1797 = vmatpush1.msra.mxu0 %v396
  %1798 = vmatprep.subr.mxu0 %v393
  %1799 = vmatpush1.msra.mxu0 %v392
  %1800 = vmatprep.subr.mxu0 %v389
  %1801 = vmatpush1.msra.mxu0 %v388
  %1802 = vmatprep.subr.mxu0 %v385
  %1803 = vmatpush1.msra.mxu0 %v384
  %1804 = vmatprep.subr.mxu0 %v381
  %1805 = vmatpush1.msra.mxu0 %v380
  %1806 = vmatprep.subr.mxu0 0.0
  %1807 = vmatpush2.msra.mxu0 0.0
  %1808 = vmatprep.subr.mxu0 0.0
  %1809 = vmatpush2.msra.mxu0 0.0
  %1810 = vmatprep.subr.mxu0 0.0
  %1811 = vmatpush2.msra.mxu0 0.0
  %1812 = vmatprep.subr.mxu0 0.0
  %1813 = vmatpush2.msra.mxu0 0.0
  %1814 = vmatprep.subr.mxu0 0.0
  %1815 = vmatpush2.msra.mxu0 0.0
  %1816 = vmatprep.subr.mxu0 0.0
  %1817 = vmatpush2.msra.mxu0 0.0
  %1818 = vmatprep.subr.mxu0 0.0
  %1819 = vmatpush2.msra.mxu0 0.0
  %1820 = vmatprep.subr.mxu0 0.0
  %1821 = vmatpush2.msra.mxu0 0.0
  %1822 = vmatprep.subr.mxu0 0.0
  %1823 = vmatpush2.msra.mxu0 0.0
  %1824 = vmatprep.subr.mxu0 0.0
  %1825 = vmatpush2.msra.mxu0 0.0
  %1826 = vmatprep.subr.mxu0 0.0
  %1827 = vmatpush2.msra.mxu0 0.0
  %1828 = vmatprep.subr.mxu0 0.0
  %1829 = vmatpush2.msra.mxu0 0.0
  %1830 = vmatprep.subr.mxu0 0.0
  %1831 = vmatpush2.msra.mxu0 0.0
  %1832 = vmatprep.subr.mxu0 0.0
  %1833 = vmatpush2.msra.mxu0 0.0
  %1834 = vmatprep.subr.mxu0 0.0
  %1835 = vmatpush2.msra.mxu0 0.0
  %1836 = vmatprep.subr.mxu0 0.0
  %1837 = vmatpush2.msra.mxu0 0.0
  %1838 = vmatprep.mubr.f32.mxu0 0.0
  %1839 = vmatmul.mubr.f32.gmra.mxu0 %v1693
  %v1840 = vpop.f32.mrf.mxu0
  %v1841 = vadd.f32 0.0, %v1840
  %v1842 = vpop.f32.mrf.mxu0
  %v1843 = vadd.f32 0.0, %v1842
  %1844 = vdwg.mxu0
  %v1845 = vadd.f32 %v1699, %v1770
  %v1846 = vadd.f32 %v1700, %v1772
  %v1847 = vadd.f32 %v1701, %v1841
  %v1848 = vadd.f32 %v1702, %v1843
  %v1849 = vxor.u32 %v1845, 2147483648
  %v1850 = vmul.f32 %v1849, 1.442695
  %v1851 = vpow.pop %v1850
  %v1852 = vadd.f32 %v1851, 1.0
  %v1853 = vrcp.pop %v1852
  %v1854 = vmul.f32 1.0, %v1853
  %v1855 = vxor.u32 %v1846, 2147483648
  %v1856 = vmul.f32 %v1855, 1.442695
  %v1857 = vpow.pop %v1856
  %v1858 = vadd.f32 %v1857, 1.0
  %v1859 = vrcp.pop %v1858
  %v1860 = vmul.f32 1.0, %v1859
  %v1861 = vtanh.pop %v1847
  %v1862 = vxor.u32 %v1848, 2147483648
  %v1863 = vmul.f32 %v1862, 1.442695
  %v1864 = vpow.pop %v1863
  %v1865 = vadd.f32 %v1864, 1.0
  %v1866 = vrcp.pop %v1865
  %v1867 = vmul.f32 1.0, %v1866
  %v1868 = vmul.f32 %v1860, %v1691
  %v1869 = vmul.f32 %v1854, %v1861
  %v1870 = vadd.f32 %v1868, %v1869
  %v1871 = vtanh.pop %v1870
  %v1872 = vmul.f32 %v1867, %v1871
  %s1873 = scalar_lea.vmem %s4, 56
  %1874 = vst [vmem:[%s1873] sm:$0xff] %v1872
  %1875 = vst [vmem:[#allocation2] sm:$0xff] %v1872
  %1876 = vst [vmem:[#allocation3] sm:$0xff] %v1870
  %1877 = vst [vmem:[%s5] sm:$0xff] %v1872
  %1878 = vst [vmem:[%s6] sm:$0xff] %v1870
  // Predicated region
  $region22: #{encoder_forward.2} parent=0 // pred_check
    _
  $region23: #{encoder_forward.2} parent=0 // pred_check_branch
    %1880 = sbr.rel (0) target = $region25
  $region24: #{encoder_forward.2} parent=0 // pred_region
    _
  $region25: #{encoder_forward.2} parent=0 // pred_fallthru
    _
  // Predicated region
  $region26: #{encoder_forward.2} parent=0 // pred_check
    _
  $region27: #{encoder_forward.2} parent=0 // pred_check_branch
    %1882 = sbr.rel (0) target = $region29
  $region28: #{encoder_forward.2} parent=0 // pred_region
    _
  $region29: #{encoder_forward.2} parent=0 // pred_fallthru
    _
  // Predicated region
  $region30: #{encoder_forward.2} parent=0 // pred_check
    _
  $region31: #{encoder_forward.2} parent=0 // pred_check_branch
    %1884 = sbr.rel (0) target = $region33
  $region32: #{encoder_forward.2} parent=0 // pred_region
    _
  $region33: #{encoder_forward.2} parent=0 // pred_fallthru
    _
  // Predicated region
  $region34: #{encoder_forward.2} parent=0 // pred_check
    _
  $region35: #{encoder_forward.2} parent=0 // pred_check_branch
    %1886 = sbr.rel (0) target = $region37
  $region36: #{encoder_forward.2} parent=0 // pred_region
    _
  $region37: #{encoder_forward.2} parent=0 // pred_fallthru
    _
  // Predicated region
  $region38: #{encoder_forward.2} parent=0 // pred_check
    _
  $region39: #{encoder_forward.2} parent=0 // pred_check_branch
    %1888 = sbr.rel (0) target = $region41
  $region40: #{encoder_forward.2} parent=0 // pred_region
    _
  $region41: #{encoder_forward.2} parent=0 // pred_fallthru
    _
  // Predicated region
  $region42: #{encoder_forward.2} parent=0 // pred_check
    _
  $region43: #{encoder_forward.2} parent=0 // pred_check_branch
    %1890 = sbr.rel (0) target = $region45
  $region44: #{encoder_forward.2} parent=0 // pred_region
    _
  $region45: #{encoder_forward.2} parent=0 // pred_fallthru
    _

</llo_original>
